<compile_context>
chip_gen: v6e
topology: v6e:2x2x1
jax: 0.10.0
libtpu: 0.0.40
codegen_flags: <defaults>
</compile_context>

<pallas_src>
import functools

import jax
import jax.numpy as jnp
from jax.experimental import pallas as pl
from jax.experimental.pallas import tpu as pltpu


LEAKY_SLOPE = 0.01
BN_EPS = 1e-5
_HIDDEN = (10, 20, 50)


def _leaky_relu(x):
    return jnp.where(x >= 0, x, LEAKY_SLOPE * x)


def ann_cal_kernel(x_ref,
                   w1_ref, b1_ref, g1_ref, be1_ref,
                   w2_ref, b2_ref, g2_ref, be2_ref,
                   w3_ref, b3_ref, g3_ref, be3_ref,
                   w4_ref, b4_ref,
                   o_ref,
                   a1_ref, a2_ref, a3_ref,
                   s1_ref, q1_ref, s2_ref, q2_ref, s3_ref, q3_ref,
                   *, batch, tile_b):
    """4-phase fused MLP.  Grid = (phase, batch_tile); activations are (F, TB)."""
    p = pl.program_id(0)
    t = pl.program_id(1)

    col0 = pl.multiple_of(t * tile_b, 128)
    cols = pl.ds(col0, tile_b)

    # Lane mask for the zero-padded batch columns of this tile; keeps the
    # BatchNorm statistics exact when batch is not a multiple of tile_b.
    lane = jax.lax.broadcasted_iota(jnp.int32, (1, tile_b), 1)
    mask = ((col0 + lane) < batch).astype(jnp.float32)
    inv_b = jnp.float32(1.0 / batch)

    @pl.when(jnp.logical_and(p == 0, t == 0))
    def _init_stats():
        s1_ref[...] = jnp.zeros_like(s1_ref)
        q1_ref[...] = jnp.zeros_like(q1_ref)
        s2_ref[...] = jnp.zeros_like(s2_ref)
        q2_ref[...] = jnp.zeros_like(q2_ref)
        s3_ref[...] = jnp.zeros_like(s3_ref)
        q3_ref[...] = jnp.zeros_like(q3_ref)

    def linear(h, w_ref, b_ref):
        # (F_out, F_in) @ (F_in, TB) -> (F_out, TB); batch stays on the lane axis.
        return jnp.dot(w_ref[...], h, preferred_element_type=jnp.float32) + b_ref[...]

    def leaky_masked(z):
        return _leaky_relu(z) * mask            # padded columns stay exactly 0

    def accumulate_stats(s_ref, q_ref, h):
        # Single sweep over the batch (lane) axis: sum and sum-of-squares.
        s_ref[...] += jnp.sum(h, axis=1, keepdims=True)
        q_ref[...] += jnp.sum(h * h, axis=1, keepdims=True)

    def bn_apply(h, s_ref, q_ref, g_ref, be_ref):
        mean = s_ref[...] * inv_b
        var = q_ref[...] * inv_b - mean * mean   # biased variance, E[x^2] - mean^2
        scale = g_ref[...] * jax.lax.rsqrt(var + BN_EPS)
        shift = be_ref[...] - mean * scale
        return h * scale + shift

    @pl.when(p == 0)
    def _phase0():      # Linear1 + LeakyReLU, accumulate BN1 stats
        h = leaky_masked(linear(x_ref[...].astype(jnp.float32), w1_ref, b1_ref))
        accumulate_stats(s1_ref, q1_ref, h)
        a1_ref[:, cols] = h

    @pl.when(p == 1)
    def _phase1():      # BN1 + Linear2 + LeakyReLU, accumulate BN2 stats
        h = bn_apply(a1_ref[:, cols], s1_ref, q1_ref, g1_ref, be1_ref)
        h = leaky_masked(linear(h, w2_ref, b2_ref))
        accumulate_stats(s2_ref, q2_ref, h)
        a2_ref[:, cols] = h

    @pl.when(p == 2)
    def _phase2():      # BN2 + Linear3 + LeakyReLU, accumulate BN3 stats
        h = bn_apply(a2_ref[:, cols], s2_ref, q2_ref, g2_ref, be2_ref)
        h = leaky_masked(linear(h, w3_ref, b3_ref))
        accumulate_stats(s3_ref, q3_ref, h)
        a3_ref[:, cols] = h

    @pl.when(p == 3)
    def _phase3():      # BN3 + Linear4 -> lane-dense output store
        h = bn_apply(a3_ref[:, cols], s3_ref, q3_ref, g3_ref, be3_ref)
        o_ref[...] = linear(h, w4_ref, b4_ref).astype(o_ref.dtype)


def _vmem_limit_bytes(b_pad, tile_b, n_in, n_out):
    """Generation-aware VMEM budget with headroom (v7x has only 64 MiB/TC)."""
    f32 = 4
    resident = sum(_HIDDEN) * b_pad * f32                # a1/a2/a3 activation scratch
    streamed = 2 * (n_in + n_out) * tile_b * f32         # double-buffered x / out tiles
    temps = 10 * max(_HIDDEN) * tile_b * f32             # in-kernel temporaries (generous)
    need = resident + streamed + temps + (2 << 20)       # params, stats, misc headroom
    try:
        cap = int(getattr(pltpu.get_tpu_info(), "vmem_capacity_bytes", 64 << 20))
    except Exception:
        cap = 64 << 20
    cap_with_headroom = (cap * 3) // 4                   # leave room for compiler scratch
    if need > cap_with_headroom:
        raise ValueError(
            f"batch too large for the VMEM-resident activation scratch "
            f"(~{need >> 20} MiB needed, {cap_with_headroom >> 20} MiB available); "
            "shard the batch at the JAX level.")
    return int(min(max(need, 32 << 20), cap_with_headroom))


def ann_cal_forward(x, params, *, tile_b=512):
    batch, n_in = x.shape
    n_out = params["w4"].shape[0]
    h1, h2, h3 = _HIDDEN

    tb = 128 * pl.cdiv(max(1, min(int(tile_b), batch)), 128)   # lane-aligned batch tile
    nb = pl.cdiv(batch, tb)
    b_pad = nb * tb

    # Lane-dense layout: batch on the 128-lane axis, zero-padded to b_pad columns.
    x_t = jnp.pad(x.astype(jnp.float32).T, ((0, 0), (0, b_pad - batch)))

    args = (x_t,
            params["w1"], params["b1"], params["g1"], params["be1"],
            params["w2"], params["b2"], params["g2"], params["be2"],
            params["w3"], params["b3"], params["g3"], params["be3"],
            params["w4"], params["b4"])

    const = lambda p, t: (0, 0)
    in_specs = [pl.BlockSpec((n_in, tb), lambda p, t: (0, jnp.where(p == 0, t, 0)))]
    in_specs += [pl.BlockSpec(a.shape, const) for a in args[1:]]
    out_spec = pl.BlockSpec((n_out, tb), lambda p, t: (0, jnp.where(p == 3, t, 0)))

    scratch_shapes = [
        pltpu.VMEM((h1, b_pad), jnp.float32),
        pltpu.VMEM((h2, b_pad), jnp.float32),
        pltpu.VMEM((h3, b_pad), jnp.float32),
        pltpu.VMEM((h1, 1), jnp.float32), pltpu.VMEM((h1, 1), jnp.float32),
        pltpu.VMEM((h2, 1), jnp.float32), pltpu.VMEM((h2, 1), jnp.float32),
        pltpu.VMEM((h3, 1), jnp.float32), pltpu.VMEM((h3, 1), jnp.float32),
    ]

    flops = 2 * b_pad * (n_in * h1 + h1 * h2 + h2 * h3 + h3 * n_out)
    bytes_accessed = 4 * b_pad * (n_in + n_out) + sum(4 * a.size for a in args[1:])
    cost = pl.CostEstimate(flops=flops,
                           transcendentals=nb * sum(_HIDDEN),
                           bytes_accessed=bytes_accessed)

    out_t = pl.pallas_call(
        functools.partial(ann_cal_kernel, batch=batch, tile_b=tb),
        out_shape=jax.ShapeDtypeStruct((n_out, b_pad), x.dtype),
        grid_spec=pltpu.PrefetchScalarGridSpec(
            num_scalar_prefetch=0,
            grid=(4, nb),                       # (phase, batch tile), row-major order
            in_specs=in_specs,
            out_specs=out_spec,
            scratch_shapes=scratch_shapes),
        compiler_params=pltpu.CompilerParams(
            # phases and BN-stat accumulation are order-dependent -> arbitrary
            dimension_semantics=("arbitrary", "arbitrary"),
            vmem_limit_bytes=_vmem_limit_bytes(b_pad, tb, n_in, n_out)),
        cost_estimate=cost,
    )(*args)

    # Back to PyTorch (batch, features) layout; drop the padded batch columns.
    return out_t[:, :batch].T


def init_params(key, n_in, n_out, dtype=jnp.float32):
    """Synthetic parameters in PyTorch-native layout: W (out, in); b/gamma/beta (F, 1)."""
    dims = [(n_in, _HIDDEN[0]), (_HIDDEN[0], _HIDDEN[1]),
            (_HIDDEN[1], _HIDDEN[2]), (_HIDDEN[2], n_out)]
    params = {}
    keys = jax.random.split(key, 2 * len(dims))
    for i, (fi, fo) in enumerate(dims):
        bound = 1.0 / (fi ** 0.5)
        params[f"w{i + 1}"] = jax.random.uniform(keys[2 * i], (fo, fi), dtype, -bound, bound)
        params[f"b{i + 1}"] = jax.random.uniform(keys[2 * i + 1], (fo, 1), dtype, -bound, bound)
    for i, f in enumerate(_HIDDEN):
        params[f"g{i + 1}"] = jnp.ones((f, 1), dtype)    # PyTorch BN init: gamma=1
        params[f"be{i + 1}"] = jnp.zeros((f, 1), dtype)  # beta=0
    return params


def ann_cal_reference(x, params):
    """Pure-JAX reference (standard (batch, features) layout) for correctness checks."""
    def lin(h, w, b):
        return jnp.dot(h, w.T, precision=jax.lax.Precision.HIGHEST) + b.T

    def bn(h, g, be):
        m = jnp.mean(h, axis=0, keepdims=True)
        v = jnp.mean((h - m) ** 2, axis=0, keepdims=True)
        return (h - m) * jax.lax.rsqrt(v + BN_EPS) * g.T + be.T

    h = x.astype(jnp.float32)
    h = bn(_leaky_relu(lin(h, params["w1"], params["b1"])), params["g1"], params["be1"])
    h = bn(_leaky_relu(lin(h, params["w2"], params["b2"])), params["g2"], params["be2"])
    h = bn(_leaky_relu(lin(h, params["w3"], params["b3"])), params["g3"], params["be3"])
    return lin(h, params["w4"], params["b4"])


if __name__ == "__main__":
    key = jax.random.PRNGKey(0)
    k_x, k_p = jax.random.split(key)

    # Small but non-trivial: batch=160 with tile_b=128 exercises two batch tiles,
    # the lane mask for the padded columns, and all four phases.
    batch, n_in, n_out = 160, 16, 4
    x = jax.random.normal(k_x, (batch, n_in), jnp.float32)
    params = init_params(k_p, n_in, n_out)

    out = ann_cal_forward(x, params, tile_b=128)
    out = jax.block_until_ready(out)

    ref = ann_cal_reference(x, params)
    assert out.shape == (batch, n_out)
    assert jnp.allclose(out, ref, atol=1e-4, rtol=1e-4), "mismatch vs JAX reference"

    print("KERNEL_OK")
</pallas_src>

<mosaic_0001>
module attributes {stable_mosaic.version = 11 : i64} {
  func.func @ann_cal_kernel(%arg0: i32, %arg1: i32, %arg2: memref<16x128xf32, #tpu.memory_space<vmem>>, %arg3: memref<10x16xf32, #tpu.memory_space<vmem>>, %arg4: memref<10x1xf32, #tpu.memory_space<vmem>>, %arg5: memref<10x1xf32, #tpu.memory_space<vmem>>, %arg6: memref<10x1xf32, #tpu.memory_space<vmem>>, %arg7: memref<20x10xf32, #tpu.memory_space<vmem>>, %arg8: memref<20x1xf32, #tpu.memory_space<vmem>>, %arg9: memref<20x1xf32, #tpu.memory_space<vmem>>, %arg10: memref<20x1xf32, #tpu.memory_space<vmem>>, %arg11: memref<50x20xf32, #tpu.memory_space<vmem>>, %arg12: memref<50x1xf32, #tpu.memory_space<vmem>>, %arg13: memref<50x1xf32, #tpu.memory_space<vmem>>, %arg14: memref<50x1xf32, #tpu.memory_space<vmem>>, %arg15: memref<4x50xf32, #tpu.memory_space<vmem>>, %arg16: memref<4x1xf32, #tpu.memory_space<vmem>>, %arg17: memref<4x128xf32, #tpu.memory_space<vmem>>, %arg18: memref<10x256xf32, #tpu.memory_space<vmem>>, %arg19: memref<20x256xf32, #tpu.memory_space<vmem>>, %arg20: memref<50x256xf32, #tpu.memory_space<vmem>>, %arg21: memref<10x1xf32, #tpu.memory_space<vmem>>, %arg22: memref<10x1xf32, #tpu.memory_space<vmem>>, %arg23: memref<20x1xf32, #tpu.memory_space<vmem>>, %arg24: memref<20x1xf32, #tpu.memory_space<vmem>>, %arg25: memref<50x1xf32, #tpu.memory_space<vmem>>, %arg26: memref<50x1xf32, #tpu.memory_space<vmem>>) attributes {dimension_semantics = [#tpu.dimension_semantics<arbitrary>, #tpu.dimension_semantics<arbitrary>], iteration_bounds = array<i64: 4, 2>, scalar_prefetch = 0 : i64, scratch_operands = 9 : i64, tpu.core_type = #tpu.core_type<tc>, window_params = [{transform_indices = @transform_0, window_bounds = array<i64: 16, 128>}, {pipeline_mode = #tpu.pipeline_mode<synchronous>, transform_indices = @transform_1, window_bounds = array<i64: 10, 16>}, {pipeline_mode = #tpu.pipeline_mode<synchronous>, transform_indices = @transform_2, window_bounds = array<i64: 10, 1>}, {pipeline_mode = #tpu.pipeline_mode<synchronous>, transform_indices = @transform_3, window_bounds = array<i64: 10, 1>}, {pipeline_mode = #tpu.pipeline_mode<synchronous>, transform_indices = @transform_4, window_bounds = array<i64: 10, 1>}, {pipeline_mode = #tpu.pipeline_mode<synchronous>, transform_indices = @transform_5, window_bounds = array<i64: 20, 10>}, {pipeline_mode = #tpu.pipeline_mode<synchronous>, transform_indices = @transform_6, window_bounds = array<i64: 20, 1>}, {pipeline_mode = #tpu.pipeline_mode<synchronous>, transform_indices = @transform_7, window_bounds = array<i64: 20, 1>}, {pipeline_mode = #tpu.pipeline_mode<synchronous>, transform_indices = @transform_8, window_bounds = array<i64: 20, 1>}, {pipeline_mode = #tpu.pipeline_mode<synchronous>, transform_indices = @transform_9, window_bounds = array<i64: 50, 20>}, {pipeline_mode = #tpu.pipeline_mode<synchronous>, transform_indices = @transform_10, window_bounds = array<i64: 50, 1>}, {pipeline_mode = #tpu.pipeline_mode<synchronous>, transform_indices = @transform_11, window_bounds = array<i64: 50, 1>}, {pipeline_mode = #tpu.pipeline_mode<synchronous>, transform_indices = @transform_12, window_bounds = array<i64: 50, 1>}, {pipeline_mode = #tpu.pipeline_mode<synchronous>, transform_indices = @transform_13, window_bounds = array<i64: 4, 50>}, {pipeline_mode = #tpu.pipeline_mode<synchronous>, transform_indices = @transform_14, window_bounds = array<i64: 4, 1>}, {transform_indices = @transform_15, window_bounds = array<i64: 4, 128>}]} {
    %c128_i32 = arith.constant 128 : i32
    %0 = arith.muli %arg1, %c128_i32 : i32
    %1 = tpu.assume_multiple %0, 128 : i32
    %2 = tpu.iota {dimensions = array<i32: 1>} : vector<1x128xi32>
    %3 = vector.broadcast %1 : i32 to vector<1x128xi32>
    %4 = arith.addi %3, %2 : vector<1x128xi32>
    %c160_i32 = arith.constant 160 : i32
    %5 = vector.broadcast %c160_i32 : i32 to vector<1x128xi32>
    %6 = arith.cmpi slt, %4, %5 : vector<1x128xi32>
    %7 = arith.extui %6 : vector<1x128xi1> to vector<1x128xi32>
    %8 = arith.sitofp %7 : vector<1x128xi32> to vector<1x128xf32>
    %c0_i32 = arith.constant 0 : i32
    %9 = arith.cmpi eq, %arg0, %c0_i32 : i32
    %c0_i32_0 = arith.constant 0 : i32
    %10 = arith.cmpi eq, %arg1, %c0_i32_0 : i32
    %11 = arith.andi %9, %10 : i1
    %12 = arith.extui %11 : i1 to i32
    %c0_i32_1 = arith.constant 0 : i32
    %13 = arith.cmpi ne, %12, %c0_i32_1 : i32
    scf.if %13 {
      %cst_9 = arith.constant 0.000000e+00 : f32
      %26 = vector.broadcast %cst_9 : f32 to vector<10x1xf32>
      %c0 = arith.constant 0 : index
      %c0_10 = arith.constant 0 : index
      %27 = vector.load %arg21[%c0, %c0_10] : memref<10x1xf32, #tpu.memory_space<vmem>>, vector<10x1xf32>
      tpu.vector_store %arg21[%c0, %c0_10], %26 {strides = array<i32>} : memref<10x1xf32, #tpu.memory_space<vmem>>, vector<10x1xf32>,
      %cst_11 = arith.constant 0.000000e+00 : f32
      %28 = vector.broadcast %cst_11 : f32 to vector<10x1xf32>
      %c0_12 = arith.constant 0 : index
      %c0_13 = arith.constant 0 : index
      %29 = vector.load %arg22[%c0_12, %c0_13] : memref<10x1xf32, #tpu.memory_space<vmem>>, vector<10x1xf32>
      tpu.vector_store %arg22[%c0_12, %c0_13], %28 {strides = array<i32>} : memref<10x1xf32, #tpu.memory_space<vmem>>, vector<10x1xf32>,
      %cst_14 = arith.constant 0.000000e+00 : f32
      %30 = vector.broadcast %cst_14 : f32 to vector<20x1xf32>
      %c0_15 = arith.constant 0 : index
      %c0_16 = arith.constant 0 : index
      %31 = vector.load %arg23[%c0_15, %c0_16] : memref<20x1xf32, #tpu.memory_space<vmem>>, vector<20x1xf32>
      tpu.vector_store %arg23[%c0_15, %c0_16], %30 {strides = array<i32>} : memref<20x1xf32, #tpu.memory_space<vmem>>, vector<20x1xf32>,
      %cst_17 = arith.constant 0.000000e+00 : f32
      %32 = vector.broadcast %cst_17 : f32 to vector<20x1xf32>
      %c0_18 = arith.constant 0 : index
      %c0_19 = arith.constant 0 : index
      %33 = vector.load %arg24[%c0_18, %c0_19] : memref<20x1xf32, #tpu.memory_space<vmem>>, vector<20x1xf32>
      tpu.vector_store %arg24[%c0_18, %c0_19], %32 {strides = array<i32>} : memref<20x1xf32, #tpu.memory_space<vmem>>, vector<20x1xf32>,
      %cst_20 = arith.constant 0.000000e+00 : f32
      %34 = vector.broadcast %cst_20 : f32 to vector<50x1xf32>
      %c0_21 = arith.constant 0 : index
      %c0_22 = arith.constant 0 : index
      %35 = vector.load %arg25[%c0_21, %c0_22] : memref<50x1xf32, #tpu.memory_space<vmem>>, vector<50x1xf32>
      tpu.vector_store %arg25[%c0_21, %c0_22], %34 {strides = array<i32>} : memref<50x1xf32, #tpu.memory_space<vmem>>, vector<50x1xf32>,
      %cst_23 = arith.constant 0.000000e+00 : f32
      %36 = vector.broadcast %cst_23 : f32 to vector<50x1xf32>
      %c0_24 = arith.constant 0 : index
      %c0_25 = arith.constant 0 : index
      %37 = vector.load %arg26[%c0_24, %c0_25] : memref<50x1xf32, #tpu.memory_space<vmem>>, vector<50x1xf32>
      tpu.vector_store %arg26[%c0_24, %c0_25], %36 {strides = array<i32>} : memref<50x1xf32, #tpu.memory_space<vmem>>, vector<50x1xf32>,
    } else {
    }
    %c0_i32_2 = arith.constant 0 : i32
    %14 = arith.cmpi eq, %arg0, %c0_i32_2 : i32
    %15 = arith.extui %14 : i1 to i32
    %c0_i32_3 = arith.constant 0 : i32
    %16 = arith.cmpi ne, %15, %c0_i32_3 : i32
    scf.if %16 {
      %c0 = arith.constant 0 : index
      %c0_9 = arith.constant 0 : index
      %26 = vector.load %arg2[%c0, %c0_9] : memref<16x128xf32, #tpu.memory_space<vmem>>, vector<16x128xf32>
      %c0_10 = arith.constant 0 : index
      %c0_11 = arith.constant 0 : index
      %27 = vector.load %arg3[%c0_10, %c0_11] : memref<10x16xf32, #tpu.memory_space<vmem>>, vector<10x16xf32>
      %cst_12 = arith.constant dense<0.000000e+00> : vector<10x128xf32>
      %28 = tpu.matmul %27, %26, %cst_12 {dimension_numbers = #tpu.dot_dimension_numbers<[1], [0], [0], [1], [0, 0, 1, 1], [], []>} : vector<10x16xf32>, vector<16x128xf32>, vector<10x128xf32> -> vector<10x128xf32>
      %c0_13 = arith.constant 0 : index
      %c0_14 = arith.constant 0 : index
      %29 = vector.load %arg4[%c0_13, %c0_14] : memref<10x1xf32, #tpu.memory_space<vmem>>, vector<10x1xf32>
      %30 = vector.broadcast %29 : vector<10x1xf32> to vector<10x128xf32>
      %31 = arith.addf %28, %30 : vector<10x128xf32>
      %cst_15 = arith.constant 0.000000e+00 : f32
      %32 = vector.broadcast %cst_15 : f32 to vector<10x128xf32>
      %33 = arith.cmpf oge, %31, %32 : vector<10x128xf32>
      %cst_16 = arith.constant 0.00999999977 : f32
      %34 = vector.broadcast %cst_16 : f32 to vector<10x128xf32>
      %35 = arith.mulf %34, %31 : vector<10x128xf32>
      %36 = arith.select %33, %31, %35 : vector<10x128xi1>, vector<10x128xf32>
      %37 = vector.broadcast %8 : vector<1x128xf32> to vector<10x128xf32>
      %38 = arith.mulf %36, %37 : vector<10x128xf32>
      %c0_17 = arith.constant 0 : index
      %c0_18 = arith.constant 0 : index
      %39 = vector.load %arg21[%c0_17, %c0_18] : memref<10x1xf32, #tpu.memory_space<vmem>>, vector<10x1xf32>
      %cst_19 = arith.constant dense<0.000000e+00> : vector<10xf32>
      %40 = vector.multi_reduction <add>, %38, %cst_19 [1] : vector<10x128xf32> to vector<10xf32>
      %41 = vector.shape_cast %40 : vector<10xf32> to vector<10x1xf32>
      %42 = arith.addf %39, %41 : vector<10x1xf32>
      %c0_20 = arith.constant 0 : index
      %c0_21 = arith.constant 0 : index
      %43 = vector.load %arg21[%c0_20, %c0_21] : memref<10x1xf32, #tpu.memory_space<vmem>>, vector<10x1xf32>
      tpu.vector_store %arg21[%c0_20, %c0_21], %42 {strides = array<i32>} : memref<10x1xf32, #tpu.memory_space<vmem>>, vector<10x1xf32>,
      %c0_22 = arith.constant 0 : index
      %c0_23 = arith.constant 0 : index
      %44 = vector.load %arg22[%c0_22, %c0_23] : memref<10x1xf32, #tpu.memory_space<vmem>>, vector<10x1xf32>
      %45 = arith.mulf %38, %38 : vector<10x128xf32>
      %cst_24 = arith.constant dense<0.000000e+00> : vector<10xf32>
      %46 = vector.multi_reduction <add>, %45, %cst_24 [1] : vector<10x128xf32> to vector<10xf32>
      %47 = vector.shape_cast %46 : vector<10xf32> to vector<10x1xf32>
      %48 = arith.addf %44, %47 : vector<10x1xf32>
      %c0_25 = arith.constant 0 : index
      %c0_26 = arith.constant 0 : index
      %49 = vector.load %arg22[%c0_25, %c0_26] : memref<10x1xf32, #tpu.memory_space<vmem>>, vector<10x1xf32>
      tpu.vector_store %arg22[%c0_25, %c0_26], %48 {strides = array<i32>} : memref<10x1xf32, #tpu.memory_space<vmem>>, vector<10x1xf32>,
      %c0_27 = arith.constant 0 : index
      %50 = arith.index_cast %1 : i32 to index
      %51 = vector.load %arg18[%c0_27, %50] : memref<10x256xf32, #tpu.memory_space<vmem>>, vector<10x128xf32>
      tpu.vector_store %arg18[%c0_27, %50], %38 {strides = array<i32>} : memref<10x256xf32, #tpu.memory_space<vmem>>, vector<10x128xf32>,
    } else {
    }
    %c1_i32 = arith.constant 1 : i32
    %17 = arith.cmpi eq, %arg0, %c1_i32 : i32
    %18 = arith.extui %17 : i1 to i32
    %cst = arith.constant 6.250000e-03 : f32
    %c0_i32_4 = arith.constant 0 : i32
    %19 = arith.cmpi ne, %18, %c0_i32_4 : i32
    scf.if %19 {
      %c0 = arith.constant 0 : index
      %26 = arith.index_cast %1 : i32 to index
      %27 = vector.load %arg18[%c0, %26] : memref<10x256xf32, #tpu.memory_space<vmem>>, vector<10x128xf32>
      %c0_9 = arith.constant 0 : index
      %c0_10 = arith.constant 0 : index
      %28 = vector.load %arg21[%c0_9, %c0_10] : memref<10x1xf32, #tpu.memory_space<vmem>>, vector<10x1xf32>
      %29 = vector.broadcast %cst : f32 to vector<10x1xf32>
      %30 = arith.mulf %28, %29 : vector<10x1xf32>
      %c0_11 = arith.constant 0 : index
      %c0_12 = arith.constant 0 : index
      %31 = vector.load %arg22[%c0_11, %c0_12] : memref<10x1xf32, #tpu.memory_space<vmem>>, vector<10x1xf32>
      %32 = vector.broadcast %cst : f32 to vector<10x1xf32>
      %33 = arith.mulf %31, %32 : vector<10x1xf32>
      %34 = arith.mulf %30, %30 : vector<10x1xf32>
      %35 = arith.subf %33, %34 : vector<10x1xf32>
      %c0_13 = arith.constant 0 : index
      %c0_14 = arith.constant 0 : index
      %36 = vector.load %arg5[%c0_13, %c0_14] : memref<10x1xf32, #tpu.memory_space<vmem>>, vector<10x1xf32>
      %cst_15 = arith.constant 9.99999974E-6 : f32
      %37 = vector.broadcast %cst_15 : f32 to vector<10x1xf32>
      %38 = arith.addf %35, %37 : vector<10x1xf32>
      %39 = math.rsqrt %38 : vector<10x1xf32>
      %40 = arith.mulf %36, %39 : vector<10x1xf32>
      %c0_16 = arith.constant 0 : index
      %c0_17 = arith.constant 0 : index
      %41 = vector.load %arg6[%c0_16, %c0_17] : memref<10x1xf32, #tpu.memory_space<vmem>>, vector<10x1xf32>
      %42 = arith.mulf %30, %40 : vector<10x1xf32>
      %43 = arith.subf %41, %42 : vector<10x1xf32>
      %44 = vector.broadcast %40 : vector<10x1xf32> to vector<10x128xf32>
      %45 = arith.mulf %27, %44 : vector<10x128xf32>
      %46 = vector.broadcast %43 : vector<10x1xf32> to vector<10x128xf32>
      %47 = arith.addf %45, %46 : vector<10x128xf32>
      %c0_18 = arith.constant 0 : index
      %c0_19 = arith.constant 0 : index
      %48 = vector.load %arg7[%c0_18, %c0_19] : memref<20x10xf32, #tpu.memory_space<vmem>>, vector<20x10xf32>
      %cst_20 = arith.constant dense<0.000000e+00> : vector<20x128xf32>
      %49 = tpu.matmul %48, %47, %cst_20 {dimension_numbers = #tpu.dot_dimension_numbers<[1], [0], [0], [1], [0, 0, 1, 1], [], []>} : vector<20x10xf32>, vector<10x128xf32>, vector<20x128xf32> -> vector<20x128xf32>
      %c0_21 = arith.constant 0 : index
      %c0_22 = arith.constant 0 : index
      %50 = vector.load %arg8[%c0_21, %c0_22] : memref<20x1xf32, #tpu.memory_space<vmem>>, vector<20x1xf32>
      %51 = vector.broadcast %50 : vector<20x1xf32> to vector<20x128xf32>
      %52 = arith.addf %49, %51 : vector<20x128xf32>
      %cst_23 = arith.constant 0.000000e+00 : f32
      %53 = vector.broadcast %cst_23 : f32 to vector<20x128xf32>
      %54 = arith.cmpf oge, %52, %53 : vector<20x128xf32>
      %cst_24 = arith.constant 0.00999999977 : f32
      %55 = vector.broadcast %cst_24 : f32 to vector<20x128xf32>
      %56 = arith.mulf %55, %52 : vector<20x128xf32>
      %57 = arith.select %54, %52, %56 : vector<20x128xi1>, vector<20x128xf32>
      %58 = vector.broadcast %8 : vector<1x128xf32> to vector<20x128xf32>
      %59 = arith.mulf %57, %58 : vector<20x128xf32>
      %c0_25 = arith.constant 0 : index
      %c0_26 = arith.constant 0 : index
      %60 = vector.load %arg23[%c0_25, %c0_26] : memref<20x1xf32, #tpu.memory_space<vmem>>, vector<20x1xf32>
      %cst_27 = arith.constant dense<0.000000e+00> : vector<20xf32>
      %61 = vector.multi_reduction <add>, %59, %cst_27 [1] : vector<20x128xf32> to vector<20xf32>
      %62 = vector.shape_cast %61 : vector<20xf32> to vector<20x1xf32>
      %63 = arith.addf %60, %62 : vector<20x1xf32>
      %c0_28 = arith.constant 0 : index
      %c0_29 = arith.constant 0 : index
      %64 = vector.load %arg23[%c0_28, %c0_29] : memref<20x1xf32, #tpu.memory_space<vmem>>, vector<20x1xf32>
      tpu.vector_store %arg23[%c0_28, %c0_29], %63 {strides = array<i32>} : memref<20x1xf32, #tpu.memory_space<vmem>>, vector<20x1xf32>,
      %c0_30 = arith.constant 0 : index
      %c0_31 = arith.constant 0 : index
      %65 = vector.load %arg24[%c0_30, %c0_31] : memref<20x1xf32, #tpu.memory_space<vmem>>, vector<20x1xf32>
      %66 = arith.mulf %59, %59 : vector<20x128xf32>
      %cst_32 = arith.constant dense<0.000000e+00> : vector<20xf32>
      %67 = vector.multi_reduction <add>, %66, %cst_32 [1] : vector<20x128xf32> to vector<20xf32>
      %68 = vector.shape_cast %67 : vector<20xf32> to vector<20x1xf32>
      %69 = arith.addf %65, %68 : vector<20x1xf32>
      %c0_33 = arith.constant 0 : index
      %c0_34 = arith.constant 0 : index
      %70 = vector.load %arg24[%c0_33, %c0_34] : memref<20x1xf32, #tpu.memory_space<vmem>>, vector<20x1xf32>
      tpu.vector_store %arg24[%c0_33, %c0_34], %69 {strides = array<i32>} : memref<20x1xf32, #tpu.memory_space<vmem>>, vector<20x1xf32>,
      %c0_35 = arith.constant 0 : index
      %71 = arith.index_cast %1 : i32 to index
      %72 = vector.load %arg19[%c0_35, %71] : memref<20x256xf32, #tpu.memory_space<vmem>>, vector<20x128xf32>
      tpu.vector_store %arg19[%c0_35, %71], %59 {strides = array<i32>} : memref<20x256xf32, #tpu.memory_space<vmem>>, vector<20x128xf32>,
    } else {
    }
    %c2_i32 = arith.constant 2 : i32
    %20 = arith.cmpi eq, %arg0, %c2_i32 : i32
    %21 = arith.extui %20 : i1 to i32
    %cst_5 = arith.constant 6.250000e-03 : f32
    %c0_i32_6 = arith.constant 0 : i32
    %22 = arith.cmpi ne, %21, %c0_i32_6 : i32
    scf.if %22 {
      %c0 = arith.constant 0 : index
      %26 = arith.index_cast %1 : i32 to index
      %27 = vector.load %arg19[%c0, %26] : memref<20x256xf32, #tpu.memory_space<vmem>>, vector<20x128xf32>
      %c0_9 = arith.constant 0 : index
      %c0_10 = arith.constant 0 : index
      %28 = vector.load %arg23[%c0_9, %c0_10] : memref<20x1xf32, #tpu.memory_space<vmem>>, vector<20x1xf32>
      %29 = vector.broadcast %cst_5 : f32 to vector<20x1xf32>
      %30 = arith.mulf %28, %29 : vector<20x1xf32>
      %c0_11 = arith.constant 0 : index
      %c0_12 = arith.constant 0 : index
      %31 = vector.load %arg24[%c0_11, %c0_12] : memref<20x1xf32, #tpu.memory_space<vmem>>, vector<20x1xf32>
      %32 = vector.broadcast %cst_5 : f32 to vector<20x1xf32>
      %33 = arith.mulf %31, %32 : vector<20x1xf32>
      %34 = arith.mulf %30, %30 : vector<20x1xf32>
      %35 = arith.subf %33, %34 : vector<20x1xf32>
      %c0_13 = arith.constant 0 : index
      %c0_14 = arith.constant 0 : index
      %36 = vector.load %arg9[%c0_13, %c0_14] : memref<20x1xf32, #tpu.memory_space<vmem>>, vector<20x1xf32>
      %cst_15 = arith.constant 9.99999974E-6 : f32
      %37 = vector.broadcast %cst_15 : f32 to vector<20x1xf32>
      %38 = arith.addf %35, %37 : vector<20x1xf32>
      %39 = math.rsqrt %38 : vector<20x1xf32>
      %40 = arith.mulf %36, %39 : vector<20x1xf32>
      %c0_16 = arith.constant 0 : index
      %c0_17 = arith.constant 0 : index
      %41 = vector.load %arg10[%c0_16, %c0_17] : memref<20x1xf32, #tpu.memory_space<vmem>>, vector<20x1xf32>
      %42 = arith.mulf %30, %40 : vector<20x1xf32>
      %43 = arith.subf %41, %42 : vector<20x1xf32>
      %44 = vector.broadcast %40 : vector<20x1xf32> to vector<20x128xf32>
      %45 = arith.mulf %27, %44 : vector<20x128xf32>
      %46 = vector.broadcast %43 : vector<20x1xf32> to vector<20x128xf32>
      %47 = arith.addf %45, %46 : vector<20x128xf32>
      %c0_18 = arith.constant 0 : index
      %c0_19 = arith.constant 0 : index
      %48 = vector.load %arg11[%c0_18, %c0_19] : memref<50x20xf32, #tpu.memory_space<vmem>>, vector<50x20xf32>
      %cst_20 = arith.constant dense<0.000000e+00> : vector<50x128xf32>
      %49 = tpu.matmul %48, %47, %cst_20 {dimension_numbers = #tpu.dot_dimension_numbers<[1], [0], [0], [1], [0, 0, 1, 1], [], []>} : vector<50x20xf32>, vector<20x128xf32>, vector<50x128xf32> -> vector<50x128xf32>
      %c0_21 = arith.constant 0 : index
      %c0_22 = arith.constant 0 : index
      %50 = vector.load %arg12[%c0_21, %c0_22] : memref<50x1xf32, #tpu.memory_space<vmem>>, vector<50x1xf32>
      %51 = vector.broadcast %50 : vector<50x1xf32> to vector<50x128xf32>
      %52 = arith.addf %49, %51 : vector<50x128xf32>
      %cst_23 = arith.constant 0.000000e+00 : f32
      %53 = vector.broadcast %cst_23 : f32 to vector<50x128xf32>
      %54 = arith.cmpf oge, %52, %53 : vector<50x128xf32>
      %cst_24 = arith.constant 0.00999999977 : f32
      %55 = vector.broadcast %cst_24 : f32 to vector<50x128xf32>
      %56 = arith.mulf %55, %52 : vector<50x128xf32>
      %57 = arith.select %54, %52, %56 : vector<50x128xi1>, vector<50x128xf32>
      %58 = vector.broadcast %8 : vector<1x128xf32> to vector<50x128xf32>
      %59 = arith.mulf %57, %58 : vector<50x128xf32>
      %c0_25 = arith.constant 0 : index
      %c0_26 = arith.constant 0 : index
      %60 = vector.load %arg25[%c0_25, %c0_26] : memref<50x1xf32, #tpu.memory_space<vmem>>, vector<50x1xf32>
      %cst_27 = arith.constant dense<0.000000e+00> : vector<50xf32>
      %61 = vector.multi_reduction <add>, %59, %cst_27 [1] : vector<50x128xf32> to vector<50xf32>
      %62 = vector.shape_cast %61 : vector<50xf32> to vector<50x1xf32>
      %63 = arith.addf %60, %62 : vector<50x1xf32>
      %c0_28 = arith.constant 0 : index
      %c0_29 = arith.constant 0 : index
      %64 = vector.load %arg25[%c0_28, %c0_29] : memref<50x1xf32, #tpu.memory_space<vmem>>, vector<50x1xf32>
      tpu.vector_store %arg25[%c0_28, %c0_29], %63 {strides = array<i32>} : memref<50x1xf32, #tpu.memory_space<vmem>>, vector<50x1xf32>,
      %c0_30 = arith.constant 0 : index
      %c0_31 = arith.constant 0 : index
      %65 = vector.load %arg26[%c0_30, %c0_31] : memref<50x1xf32, #tpu.memory_space<vmem>>, vector<50x1xf32>
      %66 = arith.mulf %59, %59 : vector<50x128xf32>
      %cst_32 = arith.constant dense<0.000000e+00> : vector<50xf32>
      %67 = vector.multi_reduction <add>, %66, %cst_32 [1] : vector<50x128xf32> to vector<50xf32>
      %68 = vector.shape_cast %67 : vector<50xf32> to vector<50x1xf32>
      %69 = arith.addf %65, %68 : vector<50x1xf32>
      %c0_33 = arith.constant 0 : index
      %c0_34 = arith.constant 0 : index
      %70 = vector.load %arg26[%c0_33, %c0_34] : memref<50x1xf32, #tpu.memory_space<vmem>>, vector<50x1xf32>
      tpu.vector_store %arg26[%c0_33, %c0_34], %69 {strides = array<i32>} : memref<50x1xf32, #tpu.memory_space<vmem>>, vector<50x1xf32>,
      %c0_35 = arith.constant 0 : index
      %71 = arith.index_cast %1 : i32 to index
      %72 = vector.load %arg20[%c0_35, %71] : memref<50x256xf32, #tpu.memory_space<vmem>>, vector<50x128xf32>
      tpu.vector_store %arg20[%c0_35, %71], %59 {strides = array<i32>} : memref<50x256xf32, #tpu.memory_space<vmem>>, vector<50x128xf32>,
    } else {
    }
    %c3_i32 = arith.constant 3 : i32
    %23 = arith.cmpi eq, %arg0, %c3_i32 : i32
    %24 = arith.extui %23 : i1 to i32
    %cst_7 = arith.constant 6.250000e-03 : f32
    %c0_i32_8 = arith.constant 0 : i32
    %25 = arith.cmpi ne, %24, %c0_i32_8 : i32
    scf.if %25 {
      %c0 = arith.constant 0 : index
      %26 = arith.index_cast %1 : i32 to index
      %27 = vector.load %arg20[%c0, %26] : memref<50x256xf32, #tpu.memory_space<vmem>>, vector<50x128xf32>
      %c0_9 = arith.constant 0 : index
      %c0_10 = arith.constant 0 : index
      %28 = vector.load %arg25[%c0_9, %c0_10] : memref<50x1xf32, #tpu.memory_space<vmem>>, vector<50x1xf32>
      %29 = vector.broadcast %cst_7 : f32 to vector<50x1xf32>
      %30 = arith.mulf %28, %29 : vector<50x1xf32>
      %c0_11 = arith.constant 0 : index
      %c0_12 = arith.constant 0 : index
      %31 = vector.load %arg26[%c0_11, %c0_12] : memref<50x1xf32, #tpu.memory_space<vmem>>, vector<50x1xf32>
      %32 = vector.broadcast %cst_7 : f32 to vector<50x1xf32>
      %33 = arith.mulf %31, %32 : vector<50x1xf32>
      %34 = arith.mulf %30, %30 : vector<50x1xf32>
      %35 = arith.subf %33, %34 : vector<50x1xf32>
      %c0_13 = arith.constant 0 : index
      %c0_14 = arith.constant 0 : index
      %36 = vector.load %arg13[%c0_13, %c0_14] : memref<50x1xf32, #tpu.memory_space<vmem>>, vector<50x1xf32>
      %cst_15 = arith.constant 9.99999974E-6 : f32
      %37 = vector.broadcast %cst_15 : f32 to vector<50x1xf32>
      %38 = arith.addf %35, %37 : vector<50x1xf32>
      %39 = math.rsqrt %38 : vector<50x1xf32>
      %40 = arith.mulf %36, %39 : vector<50x1xf32>
      %c0_16 = arith.constant 0 : index
      %c0_17 = arith.constant 0 : index
      %41 = vector.load %arg14[%c0_16, %c0_17] : memref<50x1xf32, #tpu.memory_space<vmem>>, vector<50x1xf32>
      %42 = arith.mulf %30, %40 : vector<50x1xf32>
      %43 = arith.subf %41, %42 : vector<50x1xf32>
      %44 = vector.broadcast %40 : vector<50x1xf32> to vector<50x128xf32>
      %45 = arith.mulf %27, %44 : vector<50x128xf32>
      %46 = vector.broadcast %43 : vector<50x1xf32> to vector<50x128xf32>
      %47 = arith.addf %45, %46 : vector<50x128xf32>
      %c0_18 = arith.constant 0 : index
      %c0_19 = arith.constant 0 : index
      %48 = vector.load %arg15[%c0_18, %c0_19] : memref<4x50xf32, #tpu.memory_space<vmem>>, vector<4x50xf32>
      %cst_20 = arith.constant dense<0.000000e+00> : vector<4x128xf32>
      %49 = tpu.matmul %48, %47, %cst_20 {dimension_numbers = #tpu.dot_dimension_numbers<[1], [0], [0], [1], [0, 0, 1, 1], [], []>} : vector<4x50xf32>, vector<50x128xf32>, vector<4x128xf32> -> vector<4x128xf32>
      %c0_21 = arith.constant 0 : index
      %c0_22 = arith.constant 0 : index
      %50 = vector.load %arg16[%c0_21, %c0_22] : memref<4x1xf32, #tpu.memory_space<vmem>>, vector<4x1xf32>
      %51 = vector.broadcast %50 : vector<4x1xf32> to vector<4x128xf32>
      %52 = arith.addf %49, %51 : vector<4x128xf32>
      %c0_23 = arith.constant 0 : index
      %c0_24 = arith.constant 0 : index
      %53 = vector.load %arg17[%c0_23, %c0_24] : memref<4x128xf32, #tpu.memory_space<vmem>>, vector<4x128xf32>
      tpu.vector_store %arg17[%c0_23, %c0_24], %52 {strides = array<i32>} : memref<4x128xf32, #tpu.memory_space<vmem>>, vector<4x128xf32>,
    } else {
    }
    return
  }
  func.func @transform_0(%arg0: i32, %arg1: i32) -> (i32, i32) {
    %c0_i32 = arith.constant 0 : i32
    %0 = arith.cmpi eq, %arg0, %c0_i32 : i32
    %c0_i32_0 = arith.constant 0 : i32
    %1 = arith.select %0, %arg1, %c0_i32_0 : i32
    %c0_i32_1 = arith.constant 0 : i32
    %c0_i32_2 = arith.constant 0 : i32
    return %c0_i32_1, %1 : i32, i32
  }
  func.func @transform_1(%arg0: i32, %arg1: i32) -> (i32, i32) {
    %c0_i32 = arith.constant 0 : i32
    %c0_i32_0 = arith.constant 0 : i32
    %c0_i32_1 = arith.constant 0 : i32
    return %c0_i32, %c0_i32_0 : i32, i32
  }
  func.func @transform_2(%arg0: i32, %arg1: i32) -> (i32, i32) {
    %c0_i32 = arith.constant 0 : i32
    %c0_i32_0 = arith.constant 0 : i32
    %c0_i32_1 = arith.constant 0 : i32
    return %c0_i32, %c0_i32_0 : i32, i32
  }
  func.func @transform_3(%arg0: i32, %arg1: i32) -> (i32, i32) {
    %c0_i32 = arith.constant 0 : i32
    %c0_i32_0 = arith.constant 0 : i32
    %c0_i32_1 = arith.constant 0 : i32
    return %c0_i32, %c0_i32_0 : i32, i32
  }
  func.func @transform_4(%arg0: i32, %arg1: i32) -> (i32, i32) {
    %c0_i32 = arith.constant 0 : i32
    %c0_i32_0 = arith.constant 0 : i32
    %c0_i32_1 = arith.constant 0 : i32
    return %c0_i32, %c0_i32_0 : i32, i32
  }
  func.func @transform_5(%arg0: i32, %arg1: i32) -> (i32, i32) {
    %c0_i32 = arith.constant 0 : i32
    %c0_i32_0 = arith.constant 0 : i32
    %c0_i32_1 = arith.constant 0 : i32
    return %c0_i32, %c0_i32_0 : i32, i32
  }
  func.func @transform_6(%arg0: i32, %arg1: i32) -> (i32, i32) {
    %c0_i32 = arith.constant 0 : i32
    %c0_i32_0 = arith.constant 0 : i32
    %c0_i32_1 = arith.constant 0 : i32
    return %c0_i32, %c0_i32_0 : i32, i32
  }
  func.func @transform_7(%arg0: i32, %arg1: i32) -> (i32, i32) {
    %c0_i32 = arith.constant 0 : i32
    %c0_i32_0 = arith.constant 0 : i32
    %c0_i32_1 = arith.constant 0 : i32
    return %c0_i32, %c0_i32_0 : i32, i32
  }
  func.func @transform_8(%arg0: i32, %arg1: i32) -> (i32, i32) {
    %c0_i32 = arith.constant 0 : i32
    %c0_i32_0 = arith.constant 0 : i32
    %c0_i32_1 = arith.constant 0 : i32
    return %c0_i32, %c0_i32_0 : i32, i32
  }
  func.func @transform_9(%arg0: i32, %arg1: i32) -> (i32, i32) {
    %c0_i32 = arith.constant 0 : i32
    %c0_i32_0 = arith.constant 0 : i32
    %c0_i32_1 = arith.constant 0 : i32
    return %c0_i32, %c0_i32_0 : i32, i32
  }
  func.func @transform_10(%arg0: i32, %arg1: i32) -> (i32, i32) {
    %c0_i32 = arith.constant 0 : i32
    %c0_i32_0 = arith.constant 0 : i32
    %c0_i32_1 = arith.constant 0 : i32
    return %c0_i32, %c0_i32_0 : i32, i32
  }
  func.func @transform_11(%arg0: i32, %arg1: i32) -> (i32, i32) {
    %c0_i32 = arith.constant 0 : i32
    %c0_i32_0 = arith.constant 0 : i32
    %c0_i32_1 = arith.constant 0 : i32
    return %c0_i32, %c0_i32_0 : i32, i32
  }
  func.func @transform_12(%arg0: i32, %arg1: i32) -> (i32, i32) {
    %c0_i32 = arith.constant 0 : i32
    %c0_i32_0 = arith.constant 0 : i32
    %c0_i32_1 = arith.constant 0 : i32
    return %c0_i32, %c0_i32_0 : i32, i32
  }
  func.func @transform_13(%arg0: i32, %arg1: i32) -> (i32, i32) {
    %c0_i32 = arith.constant 0 : i32
    %c0_i32_0 = arith.constant 0 : i32
    %c0_i32_1 = arith.constant 0 : i32
    return %c0_i32, %c0_i32_0 : i32, i32
  }
  func.func @transform_14(%arg0: i32, %arg1: i32) -> (i32, i32) {
    %c0_i32 = arith.constant 0 : i32
    %c0_i32_0 = arith.constant 0 : i32
    %c0_i32_1 = arith.constant 0 : i32
    return %c0_i32, %c0_i32_0 : i32, i32
  }
  func.func @transform_15(%arg0: i32, %arg1: i32) -> (i32, i32) {
    %c3_i32 = arith.constant 3 : i32
    %0 = arith.cmpi eq, %arg0, %c3_i32 : i32
    %c0_i32 = arith.constant 0 : i32
    %1 = arith.select %0, %arg1, %c0_i32 : i32
    %c0_i32_0 = arith.constant 0 : i32
    %c0_i32_1 = arith.constant 0 : i32
    return %c0_i32_0, %1 : i32, i32
  }
}

</mosaic_0001>

<llo_original>
// kernel: tpu_custom_call.1
$region0: #{tpu_custom_call.1}
  #allocation0 [shape = 'u32[]', space=smem, size = 0x4, offset = 0x4, fixed_abs, tag = 'smem constant byte address 0x4 - core index']
  #allocation1 [shape = 'u32[144,128]{1,0:T(1,128)}', space=vmem, size = 0x12000, scoped, tag = 'internal scratch']
  #allocation2 [shape = 'f32[10,256]{1,0:T(8,128)}', space=vmem, size = 0x4000, scoped, tag = 'scratch operand']
  #allocation3 [shape = 'f32[20,256]{1,0:T(8,128)}', space=vmem, size = 0x6000, scoped, tag = 'scratch operand']
  #allocation4 [shape = 'f32[50,256]{1,0:T(8,128)}', space=vmem, size = 0xe000, scoped, tag = 'scratch operand']
  #allocation5 [shape = 'f32[10,1]{1,0:T(8,128)}', space=vmem, size = 0x2000, scoped, tag = 'scratch operand']
  #allocation6 [shape = 'f32[10,1]{1,0:T(8,128)}', space=vmem, size = 0x2000, scoped, tag = 'scratch operand']
  #allocation7 [shape = 'f32[20,1]{1,0:T(8,128)}', space=vmem, size = 0x3000, scoped, tag = 'scratch operand']
  #allocation8 [shape = 'f32[20,1]{1,0:T(8,128)}', space=vmem, size = 0x3000, scoped, tag = 'scratch operand']
  #allocation9 [shape = 'f32[50,1]{1,0:T(8,128)}', space=vmem, size = 0x7000, scoped, tag = 'scratch operand']
  #allocation10 [shape = 'f32[50,1]{1,0:T(8,128)}', space=vmem, size = 0x7000, scoped, tag = 'scratch operand']
  %s0 = inlined_call_operand.vmem [shape: f32[16,256], index: 0, kind: input, shape index: {}]
  %s1 = inlined_call_operand.vmem [shape: f32[10,16], index: 1, kind: input, shape index: {}]
  %s2 = inlined_call_operand.vmem [shape: f32[10,1], index: 2, kind: input, shape index: {}]
  %s3 = inlined_call_operand.vmem [shape: f32[10,1], index: 3, kind: input, shape index: {}]
  %s4 = inlined_call_operand.vmem [shape: f32[10,1], index: 4, kind: input, shape index: {}]
  %s5 = inlined_call_operand.vmem [shape: f32[20,10], index: 5, kind: input, shape index: {}]
  %s6 = inlined_call_operand.vmem [shape: f32[20,1], index: 6, kind: input, shape index: {}]
  %s7 = inlined_call_operand.vmem [shape: f32[20,1], index: 7, kind: input, shape index: {}]
  %s8 = inlined_call_operand.vmem [shape: f32[20,1], index: 8, kind: input, shape index: {}]
  %s9 = inlined_call_operand.vmem [shape: f32[50,20], index: 9, kind: input, shape index: {}]
  %s10 = inlined_call_operand.vmem [shape: f32[50,1], index: 10, kind: input, shape index: {}]
  %s11 = inlined_call_operand.vmem [shape: f32[50,1], index: 11, kind: input, shape index: {}]
  %s12 = inlined_call_operand.vmem [shape: f32[50,1], index: 12, kind: input, shape index: {}]
  %s13 = inlined_call_operand.vmem [shape: f32[4,50], index: 13, kind: input, shape index: {}]
  %s14 = inlined_call_operand.vmem [shape: f32[4,1], index: 14, kind: input, shape index: {}]
  %s15 = inlined_call_operand.hbm [shape: f32[4,256], index: 15, kind: output, shape index: {}]
  %s16 = sld [smem:[#allocation0]]
  $region151: #{tpu_custom_call.1} parent=0
    _
  %s18 = ssub.s32 1, %s16
  %s19 = scalar_select 0, %s18, %s16
  $region1: #{tpu_custom_call.1} parent=0
    #allocation11 [shape = 'u8[16384]{0}', space=vmem, size = 0x4000, scoped, tag = 'input window, operand 0']
    #allocation12 [shape = 'u8[4096]{0}', space=vmem, size = 0x1000, scoped, tag = 'output window, operand 0']
    #allocation13 [shape = 's32[2]{0}', space=sflag, size = 0x8, scoped, tag = 'scoped memory for tpu_custom_call.1']
    %20 = vsyncpa [#allocation13], 0
    %s21 = scalar_lea.sflag [#allocation13], 1
    %22 = vsyncpa %s21, 0
    loop: start=0, step=1, limit=10
    $region2: #{tpu_custom_call.1} parent=1 // loop_pre_header
      _
    $region3: #{tpu_custom_call.1} parent=1 // loop_header
      %s24 = sphi 0, %s28
      %p25 = scmp.ge.s32.totalorder %s24, 10
      %s31 = sphi 0, %s43
      %s32 = sphi 0, %s39
      %s33 = sphi 0, %s31
      %s34 = sphi 0, %s32
      %s35 = sphi 0, %s33
      %s36 = sphi 0, %s34
      %s50 = sphi 0, %s52
      %s53 = sphi 0, %s50
      %s54 = sphi 0, %s53
      %s70 = sphi 0, %s54
      %s74 = sphi 0, %s74
      %s76 = sphi 0, %s74
      %s77 = sphi 0, %s76
      %s91 = sphi 0, %s77
      %s95 = sphi 0, %s95
      %s97 = sphi 0, %s95
      %s98 = sphi 0, %s97
      %s112 = sphi 0, %s98
      %s116 = sphi 0, %s116
      %s118 = sphi 0, %s116
      %s119 = sphi 0, %s118
      %s133 = sphi 0, %s119
      %s137 = sphi 0, %s137
      %s139 = sphi 0, %s137
      %s140 = sphi 0, %s139
      %s154 = sphi 0, %s140
      %s158 = sphi 0, %s158
      %s160 = sphi 0, %s158
      %s161 = sphi 0, %s160
      %s175 = sphi 0, %s161
      %s179 = sphi 0, %s179
      %s181 = sphi 0, %s179
      %s182 = sphi 0, %s181
      %s196 = sphi 0, %s182
      %s200 = sphi 0, %s200
      %s202 = sphi 0, %s200
      %s203 = sphi 0, %s202
      %s217 = sphi 0, %s203
      %s221 = sphi 0, %s221
      %s223 = sphi 0, %s221
      %s224 = sphi 0, %s223
      %s238 = sphi 0, %s224
      %s242 = sphi 0, %s242
      %s244 = sphi 0, %s242
      %s245 = sphi 0, %s244
      %s259 = sphi 0, %s245
      %s263 = sphi 0, %s263
      %s265 = sphi 0, %s263
      %s266 = sphi 0, %s265
      %s280 = sphi 0, %s266
      %s284 = sphi 0, %s284
      %s286 = sphi 0, %s284
      %s287 = sphi 0, %s286
      %s301 = sphi 0, %s287
      %s305 = sphi 0, %s305
      %s307 = sphi 0, %s305
      %s308 = sphi 0, %s307
      %s322 = sphi 0, %s308
      %s326 = sphi 0, %s326
      %s328 = sphi 0, %s326
      %s329 = sphi 0, %s328
      %s343 = sphi 0, %s329
      %s347 = sphi 0, %s347
      %s349 = sphi 0, %s347
      %s350 = sphi 0, %s349
      %s364 = sphi 0, %s350
      %s374 = sphi 0, %s376
      %s377 = sphi 0, %s374
      %s378 = sphi 0, %s377
      %s394 = sphi 0, %s378
    $region4: #{tpu_custom_call.1} parent=1 // loop_header_branch
      %27 = sbr.rel (%p25) target = $region8
    $region5: #{tpu_custom_call.1} parent=1 // loop_body
      %s29 = ssub.s32 %s24, 1
      %s30 = ssub.s32 %s24, 2
      %s37 = sadd.s32 1, %s32
      %p38 = scmp.ge.s32.totalorder %s37, 2
      %s39 = scalar_select %p38, 0, %s37
      %s40 = sadd.s32 1, %s31
      %s41 = scalar_select %p38, %s40, %s31
      %p42 = scmp.ge.s32.totalorder %s41, 4
      %s43 = scalar_select %p42, 0, %s41
      %p44 = scmp.eq.s32.totalorder %s31, 0
      %s45 = scalar_select %p44, %s32, 0
      %p46 = scmp.eq.s32.totalorder %s43, 0
      %s47 = scalar_select %p46, %s39, 0
      %s48 = ssub.s32 %s45, %s47
      %p49 = scmp.eq.s32.totalorder %s48, 0
      %s51 = sadd.s32 %s50, 1
      %s52 = scalar_select %p49, %s50, %s51
      %p55 = pneg %p49
      %p56 = scmp.eq.s32.totalorder %s24, 7
      %p57 = por %p55, %p56
      %p58 = scmp.ne.s32.totalorder %s50, %s53
      %p59 = scmp.eq.s32.totalorder %s24, 0
      %p60 = por %p58, %p59
      %p61 = scmp.ne.s32.totalorder %s50, %s53
      %p62 = scmp.eq.s32.totalorder %s29, 7
      %p63 = por %p61, %p62
      %p64 = scmp.ne.s32.totalorder %s53, %s54
      %p65 = scmp.eq.s32.totalorder %s29, 0
      %p66 = por %p64, %p65
      %p67 = scmp.ne.s32.totalorder %s53, %s54
      %p68 = scmp.eq.s32.totalorder %s30, 7
      %p69 = por %p67, %p68
      %p71 = scmp.ne.s32.totalorder %s54, %s70
      %p72 = scmp.eq.s32.totalorder %s30, 0
      %p73 = por %p71, %p72
      %s75 = sadd.s32 %s74, 1
      %p78 = scmp.eq.s32.totalorder %s24, 7
      %p79 = scmp.ne.s32.totalorder %s74, %s76
      %p80 = scmp.eq.s32.totalorder %s24, 0
      %p81 = por %p79, %p80
      %p82 = scmp.ne.s32.totalorder %s74, %s76
      %p83 = scmp.eq.s32.totalorder %s29, 7
      %p84 = por %p82, %p83
      %p85 = scmp.ne.s32.totalorder %s76, %s77
      %p86 = scmp.eq.s32.totalorder %s29, 0
      %p87 = por %p85, %p86
      %p88 = scmp.ne.s32.totalorder %s76, %s77
      %p89 = scmp.eq.s32.totalorder %s30, 7
      %p90 = por %p88, %p89
      %p92 = scmp.ne.s32.totalorder %s77, %s91
      %p93 = scmp.eq.s32.totalorder %s30, 0
      %p94 = por %p92, %p93
      %s96 = sadd.s32 %s95, 1
      %p99 = scmp.eq.s32.totalorder %s24, 7
      %p100 = scmp.ne.s32.totalorder %s95, %s97
      %p101 = scmp.eq.s32.totalorder %s24, 0
      %p102 = por %p100, %p101
      %p103 = scmp.ne.s32.totalorder %s95, %s97
      %p104 = scmp.eq.s32.totalorder %s29, 7
      %p105 = por %p103, %p104
      %p106 = scmp.ne.s32.totalorder %s97, %s98
      %p107 = scmp.eq.s32.totalorder %s29, 0
      %p108 = por %p106, %p107
      %p109 = scmp.ne.s32.totalorder %s97, %s98
      %p110 = scmp.eq.s32.totalorder %s30, 7
      %p111 = por %p109, %p110
      %p113 = scmp.ne.s32.totalorder %s98, %s112
      %p114 = scmp.eq.s32.totalorder %s30, 0
      %p115 = por %p113, %p114
      %s117 = sadd.s32 %s116, 1
      %p120 = scmp.eq.s32.totalorder %s24, 7
      %p121 = scmp.ne.s32.totalorder %s116, %s118
      %p122 = scmp.eq.s32.totalorder %s24, 0
      %p123 = por %p121, %p122
      %p124 = scmp.ne.s32.totalorder %s116, %s118
      %p125 = scmp.eq.s32.totalorder %s29, 7
      %p126 = por %p124, %p125
      %p127 = scmp.ne.s32.totalorder %s118, %s119
      %p128 = scmp.eq.s32.totalorder %s29, 0
      %p129 = por %p127, %p128
      %p130 = scmp.ne.s32.totalorder %s118, %s119
      %p131 = scmp.eq.s32.totalorder %s30, 7
      %p132 = por %p130, %p131
      %p134 = scmp.ne.s32.totalorder %s119, %s133
      %p135 = scmp.eq.s32.totalorder %s30, 0
      %p136 = por %p134, %p135
      %s138 = sadd.s32 %s137, 1
      %p141 = scmp.eq.s32.totalorder %s24, 7
      %p142 = scmp.ne.s32.totalorder %s137, %s139
      %p143 = scmp.eq.s32.totalorder %s24, 0
      %p144 = por %p142, %p143
      %p145 = scmp.ne.s32.totalorder %s137, %s139
      %p146 = scmp.eq.s32.totalorder %s29, 7
      %p147 = por %p145, %p146
      %p148 = scmp.ne.s32.totalorder %s139, %s140
      %p149 = scmp.eq.s32.totalorder %s29, 0
      %p150 = por %p148, %p149
      %p151 = scmp.ne.s32.totalorder %s139, %s140
      %p152 = scmp.eq.s32.totalorder %s30, 7
      %p153 = por %p151, %p152
      %p155 = scmp.ne.s32.totalorder %s140, %s154
      %p156 = scmp.eq.s32.totalorder %s30, 0
      %p157 = por %p155, %p156
      %s159 = sadd.s32 %s158, 1
      %p162 = scmp.eq.s32.totalorder %s24, 7
      %p163 = scmp.ne.s32.totalorder %s158, %s160
      %p164 = scmp.eq.s32.totalorder %s24, 0
      %p165 = por %p163, %p164
      %p166 = scmp.ne.s32.totalorder %s158, %s160
      %p167 = scmp.eq.s32.totalorder %s29, 7
      %p168 = por %p166, %p167
      %p169 = scmp.ne.s32.totalorder %s160, %s161
      %p170 = scmp.eq.s32.totalorder %s29, 0
      %p171 = por %p169, %p170
      %p172 = scmp.ne.s32.totalorder %s160, %s161
      %p173 = scmp.eq.s32.totalorder %s30, 7
      %p174 = por %p172, %p173
      %p176 = scmp.ne.s32.totalorder %s161, %s175
      %p177 = scmp.eq.s32.totalorder %s30, 0
      %p178 = por %p176, %p177
      %s180 = sadd.s32 %s179, 1
      %p183 = scmp.eq.s32.totalorder %s24, 7
      %p184 = scmp.ne.s32.totalorder %s179, %s181
      %p185 = scmp.eq.s32.totalorder %s24, 0
      %p186 = por %p184, %p185
      %p187 = scmp.ne.s32.totalorder %s179, %s181
      %p188 = scmp.eq.s32.totalorder %s29, 7
      %p189 = por %p187, %p188
      %p190 = scmp.ne.s32.totalorder %s181, %s182
      %p191 = scmp.eq.s32.totalorder %s29, 0
      %p192 = por %p190, %p191
      %p193 = scmp.ne.s32.totalorder %s181, %s182
      %p194 = scmp.eq.s32.totalorder %s30, 7
      %p195 = por %p193, %p194
      %p197 = scmp.ne.s32.totalorder %s182, %s196
      %p198 = scmp.eq.s32.totalorder %s30, 0
      %p199 = por %p197, %p198
      %s201 = sadd.s32 %s200, 1
      %p204 = scmp.eq.s32.totalorder %s24, 7
      %p205 = scmp.ne.s32.totalorder %s200, %s202
      %p206 = scmp.eq.s32.totalorder %s24, 0
      %p207 = por %p205, %p206
      %p208 = scmp.ne.s32.totalorder %s200, %s202
      %p209 = scmp.eq.s32.totalorder %s29, 7
      %p210 = por %p208, %p209
      %p211 = scmp.ne.s32.totalorder %s202, %s203
      %p212 = scmp.eq.s32.totalorder %s29, 0
      %p213 = por %p211, %p212
      %p214 = scmp.ne.s32.totalorder %s202, %s203
      %p215 = scmp.eq.s32.totalorder %s30, 7
      %p216 = por %p214, %p215
      %p218 = scmp.ne.s32.totalorder %s203, %s217
      %p219 = scmp.eq.s32.totalorder %s30, 0
      %p220 = por %p218, %p219
      %s222 = sadd.s32 %s221, 1
      %p225 = scmp.eq.s32.totalorder %s24, 7
      %p226 = scmp.ne.s32.totalorder %s221, %s223
      %p227 = scmp.eq.s32.totalorder %s24, 0
      %p228 = por %p226, %p227
      %p229 = scmp.ne.s32.totalorder %s221, %s223
      %p230 = scmp.eq.s32.totalorder %s29, 7
      %p231 = por %p229, %p230
      %p232 = scmp.ne.s32.totalorder %s223, %s224
      %p233 = scmp.eq.s32.totalorder %s29, 0
      %p234 = por %p232, %p233
      %p235 = scmp.ne.s32.totalorder %s223, %s224
      %p236 = scmp.eq.s32.totalorder %s30, 7
      %p237 = por %p235, %p236
      %p239 = scmp.ne.s32.totalorder %s224, %s238
      %p240 = scmp.eq.s32.totalorder %s30, 0
      %p241 = por %p239, %p240
      %s243 = sadd.s32 %s242, 1
      %p246 = scmp.eq.s32.totalorder %s24, 7
      %p247 = scmp.ne.s32.totalorder %s242, %s244
      %p248 = scmp.eq.s32.totalorder %s24, 0
      %p249 = por %p247, %p248
      %p250 = scmp.ne.s32.totalorder %s242, %s244
      %p251 = scmp.eq.s32.totalorder %s29, 7
      %p252 = por %p250, %p251
      %p253 = scmp.ne.s32.totalorder %s244, %s245
      %p254 = scmp.eq.s32.totalorder %s29, 0
      %p255 = por %p253, %p254
      %p256 = scmp.ne.s32.totalorder %s244, %s245
      %p257 = scmp.eq.s32.totalorder %s30, 7
      %p258 = por %p256, %p257
      %p260 = scmp.ne.s32.totalorder %s245, %s259
      %p261 = scmp.eq.s32.totalorder %s30, 0
      %p262 = por %p260, %p261
      %s264 = sadd.s32 %s263, 1
      %p267 = scmp.eq.s32.totalorder %s24, 7
      %p268 = scmp.ne.s32.totalorder %s263, %s265
      %p269 = scmp.eq.s32.totalorder %s24, 0
      %p270 = por %p268, %p269
      %p271 = scmp.ne.s32.totalorder %s263, %s265
      %p272 = scmp.eq.s32.totalorder %s29, 7
      %p273 = por %p271, %p272
      %p274 = scmp.ne.s32.totalorder %s265, %s266
      %p275 = scmp.eq.s32.totalorder %s29, 0
      %p276 = por %p274, %p275
      %p277 = scmp.ne.s32.totalorder %s265, %s266
      %p278 = scmp.eq.s32.totalorder %s30, 7
      %p279 = por %p277, %p278
      %p281 = scmp.ne.s32.totalorder %s266, %s280
      %p282 = scmp.eq.s32.totalorder %s30, 0
      %p283 = por %p281, %p282
      %s285 = sadd.s32 %s284, 1
      %p288 = scmp.eq.s32.totalorder %s24, 7
      %p289 = scmp.ne.s32.totalorder %s284, %s286
      %p290 = scmp.eq.s32.totalorder %s24, 0
      %p291 = por %p289, %p290
      %p292 = scmp.ne.s32.totalorder %s284, %s286
      %p293 = scmp.eq.s32.totalorder %s29, 7
      %p294 = por %p292, %p293
      %p295 = scmp.ne.s32.totalorder %s286, %s287
      %p296 = scmp.eq.s32.totalorder %s29, 0
      %p297 = por %p295, %p296
      %p298 = scmp.ne.s32.totalorder %s286, %s287
      %p299 = scmp.eq.s32.totalorder %s30, 7
      %p300 = por %p298, %p299
      %p302 = scmp.ne.s32.totalorder %s287, %s301
      %p303 = scmp.eq.s32.totalorder %s30, 0
      %p304 = por %p302, %p303
      %s306 = sadd.s32 %s305, 1
      %p309 = scmp.eq.s32.totalorder %s24, 7
      %p310 = scmp.ne.s32.totalorder %s305, %s307
      %p311 = scmp.eq.s32.totalorder %s24, 0
      %p312 = por %p310, %p311
      %p313 = scmp.ne.s32.totalorder %s305, %s307
      %p314 = scmp.eq.s32.totalorder %s29, 7
      %p315 = por %p313, %p314
      %p316 = scmp.ne.s32.totalorder %s307, %s308
      %p317 = scmp.eq.s32.totalorder %s29, 0
      %p318 = por %p316, %p317
      %p319 = scmp.ne.s32.totalorder %s307, %s308
      %p320 = scmp.eq.s32.totalorder %s30, 7
      %p321 = por %p319, %p320
      %p323 = scmp.ne.s32.totalorder %s308, %s322
      %p324 = scmp.eq.s32.totalorder %s30, 0
      %p325 = por %p323, %p324
      %s327 = sadd.s32 %s326, 1
      %p330 = scmp.eq.s32.totalorder %s24, 7
      %p331 = scmp.ne.s32.totalorder %s326, %s328
      %p332 = scmp.eq.s32.totalorder %s24, 0
      %p333 = por %p331, %p332
      %p334 = scmp.ne.s32.totalorder %s326, %s328
      %p335 = scmp.eq.s32.totalorder %s29, 7
      %p336 = por %p334, %p335
      %p337 = scmp.ne.s32.totalorder %s328, %s329
      %p338 = scmp.eq.s32.totalorder %s29, 0
      %p339 = por %p337, %p338
      %p340 = scmp.ne.s32.totalorder %s328, %s329
      %p341 = scmp.eq.s32.totalorder %s30, 7
      %p342 = por %p340, %p341
      %p344 = scmp.ne.s32.totalorder %s329, %s343
      %p345 = scmp.eq.s32.totalorder %s30, 0
      %p346 = por %p344, %p345
      %s348 = sadd.s32 %s347, 1
      %p351 = scmp.eq.s32.totalorder %s24, 7
      %p352 = scmp.ne.s32.totalorder %s347, %s349
      %p353 = scmp.eq.s32.totalorder %s24, 0
      %p354 = por %p352, %p353
      %p355 = scmp.ne.s32.totalorder %s347, %s349
      %p356 = scmp.eq.s32.totalorder %s29, 7
      %p357 = por %p355, %p356
      %p358 = scmp.ne.s32.totalorder %s349, %s350
      %p359 = scmp.eq.s32.totalorder %s29, 0
      %p360 = por %p358, %p359
      %p361 = scmp.ne.s32.totalorder %s349, %s350
      %p362 = scmp.eq.s32.totalorder %s30, 7
      %p363 = por %p361, %p362
      %p365 = scmp.ne.s32.totalorder %s350, %s364
      %p366 = scmp.eq.s32.totalorder %s30, 0
      %p367 = por %p365, %p366
      %p368 = scmp.eq.s32.totalorder %s31, 3
      %s369 = scalar_select %p368, %s32, 0
      %p370 = scmp.eq.s32.totalorder %s43, 3
      %s371 = scalar_select %p370, %s39, 0
      %s372 = ssub.s32 %s369, %s371
      %p373 = scmp.eq.s32.totalorder %s372, 0
      %s375 = sadd.s32 %s374, 1
      %s376 = scalar_select %p373, %s374, %s375
      %p379 = pneg %p373
      %p380 = scmp.eq.s32.totalorder %s24, 7
      %p381 = por %p379, %p380
      %p382 = scmp.ne.s32.totalorder %s374, %s377
      %p383 = scmp.eq.s32.totalorder %s24, 0
      %p384 = por %p382, %p383
      %p385 = scmp.ne.s32.totalorder %s374, %s377
      %p386 = scmp.eq.s32.totalorder %s29, 7
      %p387 = por %p385, %p386
      %p388 = scmp.ne.s32.totalorder %s377, %s378
      %p389 = scmp.eq.s32.totalorder %s29, 0
      %p390 = por %p388, %p389
      %p391 = scmp.ne.s32.totalorder %s377, %s378
      %p392 = scmp.eq.s32.totalorder %s30, 7
      %p393 = por %p391, %p392
      %p395 = scmp.ne.s32.totalorder %s378, %s394
      %p396 = scmp.eq.s32.totalorder %s30, 0
      %p397 = por %p395, %p396
      %p398 = scmp.le.s32.totalorder 1, %s24
      %p399 = scmp.lt.s32.totalorder %s24, 9
      %p400 = pnand %p398, %p399
      %p401 = pneg %p400
      // Predicated region
      $region9: #{tpu_custom_call.1} parent=5 // pred_check
        _
      $region10: #{tpu_custom_call.1} parent=5 // pred_check_branch
        %403 = sbr.rel (%p400) target = $region12
      $region11: #{tpu_custom_call.1} parent=5 // pred_region
        %s404 = ssub.s32 %s24, 1
        // Predicated region
        $region13: #{tpu_custom_call.1} parent=11 // pred_check
          %p405 = pneg %p87
        $region14: #{tpu_custom_call.1} parent=11 // pred_check_branch
          %407 = sbr.rel (%p405) target = $region16
        $region15: #{tpu_custom_call.1} parent=11 // pred_region
          _
        $region16: #{tpu_custom_call.1} parent=11 // pred_fallthru
          _
        // Predicated region
        $region17: #{tpu_custom_call.1} parent=11 // pred_check
          %p408 = pneg %p108
        $region18: #{tpu_custom_call.1} parent=11 // pred_check_branch
          %410 = sbr.rel (%p408) target = $region20
        $region19: #{tpu_custom_call.1} parent=11 // pred_region
          _
        $region20: #{tpu_custom_call.1} parent=11 // pred_fallthru
          _
        // Predicated region
        $region21: #{tpu_custom_call.1} parent=11 // pred_check
          %p411 = pneg %p129
        $region22: #{tpu_custom_call.1} parent=11 // pred_check_branch
          %413 = sbr.rel (%p411) target = $region24
        $region23: #{tpu_custom_call.1} parent=11 // pred_region
          _
        $region24: #{tpu_custom_call.1} parent=11 // pred_fallthru
          _
        // Predicated region
        $region25: #{tpu_custom_call.1} parent=11 // pred_check
          %p414 = pneg %p150
        $region26: #{tpu_custom_call.1} parent=11 // pred_check_branch
          %416 = sbr.rel (%p414) target = $region28
        $region27: #{tpu_custom_call.1} parent=11 // pred_region
          _
        $region28: #{tpu_custom_call.1} parent=11 // pred_fallthru
          _
        // Predicated region
        $region29: #{tpu_custom_call.1} parent=11 // pred_check
          %p417 = pneg %p171
        $region30: #{tpu_custom_call.1} parent=11 // pred_check_branch
          %419 = sbr.rel (%p417) target = $region32
        $region31: #{tpu_custom_call.1} parent=11 // pred_region
          _
        $region32: #{tpu_custom_call.1} parent=11 // pred_fallthru
          _
        // Predicated region
        $region33: #{tpu_custom_call.1} parent=11 // pred_check
          %p420 = pneg %p192
        $region34: #{tpu_custom_call.1} parent=11 // pred_check_branch
          %422 = sbr.rel (%p420) target = $region36
        $region35: #{tpu_custom_call.1} parent=11 // pred_region
          _
        $region36: #{tpu_custom_call.1} parent=11 // pred_fallthru
          _
        // Predicated region
        $region37: #{tpu_custom_call.1} parent=11 // pred_check
          %p423 = pneg %p213
        $region38: #{tpu_custom_call.1} parent=11 // pred_check_branch
          %425 = sbr.rel (%p423) target = $region40
        $region39: #{tpu_custom_call.1} parent=11 // pred_region
          _
        $region40: #{tpu_custom_call.1} parent=11 // pred_fallthru
          _
        // Predicated region
        $region41: #{tpu_custom_call.1} parent=11 // pred_check
          %p426 = pneg %p234
        $region42: #{tpu_custom_call.1} parent=11 // pred_check_branch
          %428 = sbr.rel (%p426) target = $region44
        $region43: #{tpu_custom_call.1} parent=11 // pred_region
          _
        $region44: #{tpu_custom_call.1} parent=11 // pred_fallthru
          _
        // Predicated region
        $region45: #{tpu_custom_call.1} parent=11 // pred_check
          %p429 = pneg %p255
        $region46: #{tpu_custom_call.1} parent=11 // pred_check_branch
          %431 = sbr.rel (%p429) target = $region48
        $region47: #{tpu_custom_call.1} parent=11 // pred_region
          _
        $region48: #{tpu_custom_call.1} parent=11 // pred_fallthru
          _
        // Predicated region
        $region49: #{tpu_custom_call.1} parent=11 // pred_check
          %p432 = pneg %p276
        $region50: #{tpu_custom_call.1} parent=11 // pred_check_branch
          %434 = sbr.rel (%p432) target = $region52
        $region51: #{tpu_custom_call.1} parent=11 // pred_region
          _
        $region52: #{tpu_custom_call.1} parent=11 // pred_fallthru
          _
        // Predicated region
        $region53: #{tpu_custom_call.1} parent=11 // pred_check
          %p435 = pneg %p297
        $region54: #{tpu_custom_call.1} parent=11 // pred_check_branch
          %437 = sbr.rel (%p435) target = $region56
        $region55: #{tpu_custom_call.1} parent=11 // pred_region
          _
        $region56: #{tpu_custom_call.1} parent=11 // pred_fallthru
          _
        // Predicated region
        $region57: #{tpu_custom_call.1} parent=11 // pred_check
          %p438 = pneg %p318
        $region58: #{tpu_custom_call.1} parent=11 // pred_check_branch
          %440 = sbr.rel (%p438) target = $region60
        $region59: #{tpu_custom_call.1} parent=11 // pred_region
          _
        $region60: #{tpu_custom_call.1} parent=11 // pred_fallthru
          _
        // Predicated region
        $region61: #{tpu_custom_call.1} parent=11 // pred_check
          %p441 = pneg %p339
        $region62: #{tpu_custom_call.1} parent=11 // pred_check_branch
          %443 = sbr.rel (%p441) target = $region64
        $region63: #{tpu_custom_call.1} parent=11 // pred_region
          _
        $region64: #{tpu_custom_call.1} parent=11 // pred_fallthru
          _
        // Predicated region
        $region65: #{tpu_custom_call.1} parent=11 // pred_check
          %p444 = pneg %p360
        $region66: #{tpu_custom_call.1} parent=11 // pred_check_branch
          %446 = sbr.rel (%p444) target = $region68
        $region67: #{tpu_custom_call.1} parent=11 // pred_region
          _
        $region68: #{tpu_custom_call.1} parent=11 // pred_fallthru
          _
      $region12: #{tpu_custom_call.1} parent=5 // pred_fallthru
        _
      %p447 = scmp.lt.s32.totalorder %s24, 8
      // Predicated region
      $region69: #{tpu_custom_call.1} parent=5 // pred_check
        %p448 = pneg %p447
      $region70: #{tpu_custom_call.1} parent=5 // pred_check_branch
        %450 = sbr.rel (%p448) target = $region72
      $region71: #{tpu_custom_call.1} parent=5 // pred_region
        // Predicated region
        $region73: #{tpu_custom_call.1} parent=71 // pred_check
          %p451 = pneg %p60
        $region74: #{tpu_custom_call.1} parent=71 // pred_check_branch
          %453 = sbr.rel (%p451) target = $region76
        $region75: #{tpu_custom_call.1} parent=71 // pred_region
          %s454 = sand.u32 %s50, 1
          %s455 = sand.u32 %s50, 1
          %s456 = smul.addr %s455, 16
          %s457 = scalar_lea.vmem [#allocation11], %s456
          %p458 = scmp.eq.s32.totalorder %s31, 0
          %s459 = scalar_select %p458, %s32, 0
          %s460 = smul.addr %s459, 8
          %s461 = scalar_lea.vmem %s0, %s460
          // Predicated region
          $region77: #{tpu_custom_call.1} parent=75 // pred_check
            _
          $region78: #{tpu_custom_call.1} parent=75 // pred_check_branch
            %463 = sbr.rel (0) target = $region80
          $region79: #{tpu_custom_call.1} parent=75 // pred_region
            // Predicated region
            $region81: #{tpu_custom_call.1} parent=79 // pred_check
              _
            $region82: #{tpu_custom_call.1} parent=79 // pred_check_branch
              %465 = sbr.rel (0) target = $region84
            $region83: #{tpu_custom_call.1} parent=79 // pred_region
              // Predicated region
              $region96: #{tpu_custom_call.1} parent=83 // pred_check
                _
              $region97: #{tpu_custom_call.1} parent=83 // pred_check_branch
                %483 = sbr.rel (0) target = $region99
              $region98: #{tpu_custom_call.1} parent=83 // pred_region
                loop: start=0, step=1, limit=1
                $region100: #{tpu_custom_call.1} parent=98 // loop_pre_header
                  _
                $region101: #{tpu_custom_call.1} parent=98 // loop_header
                  %s485 = sphi 0, %s489
                  %p486 = scmp.ge.s32.totalorder %s485, 1
                  %s490 = sphi %s461, %s461
                  %s491 = sphi %s457, %s457
                $region102: #{tpu_custom_call.1} parent=98 // loop_header_branch
                  %488 = sbr.rel (%p486) target = $region106
                $region103: #{tpu_custom_call.1} parent=98 // loop_body
                  %v492 = vld [vmem:[%s490] sm:$0xff]
                  %493 = vst [vmem:[%s491] sm:$0xff] %v492
                  %v494 = vld [vmem:[%s490 + $0x10] sm:$0xff]
                  %495 = vst [vmem:[%s491 + $0x8] sm:$0xff] %v494
                $region104: #{tpu_custom_call.1} parent=98 // loop_footer
                  %s489 = sadd.s32 1, %s485
                $region105: #{tpu_custom_call.1} parent=98 // loop_footer_branch
                  %484 = sbr.rel target = $region101
                $region106: #{tpu_custom_call.1} parent=98 // loop_exit
                  _
              $region99: #{tpu_custom_call.1} parent=83 // pred_fallthru
                _
              // Predicated region
              $region107: #{tpu_custom_call.1} parent=83 // pred_check
                _
              $region108: #{tpu_custom_call.1} parent=83 // pred_check_branch
                %497 = sbr.rel target = $region110
              $region109: #{tpu_custom_call.1} parent=83 // pred_region
                _
              $region110: #{tpu_custom_call.1} parent=83 // pred_fallthru
                _
            $region84: #{tpu_custom_call.1} parent=79 // pred_fallthru
              _
            // Predicated region
            $region85: #{tpu_custom_call.1} parent=79 // pred_check
              _
            $region86: #{tpu_custom_call.1} parent=79 // pred_check_branch
              %467 = sbr.rel target = $region88
            $region87: #{tpu_custom_call.1} parent=79 // pred_region
              %s469 = ssub.s32 256, 1
              loop: start=0, step=1, limit=1
              $region89: #{tpu_custom_call.1} parent=87 // loop_pre_header
                _
              $region90: #{tpu_custom_call.1} parent=87 // loop_header
                %s471 = sphi 0, %s475
                %p472 = scmp.ge.s32.totalorder %s471, 1
                %s476 = sphi %s461, %s461
                %s477 = sphi %s457, %s457
              $region91: #{tpu_custom_call.1} parent=87 // loop_header_branch
                %474 = sbr.rel (%p472) target = $region95
              $region92: #{tpu_custom_call.1} parent=87 // loop_body
                %v478 = vld [vmem:[%s476] sm:%s469]
                %479 = vst [vmem:[%s477] sm:%s469] %v478
                %v480 = vld [vmem:[%s476 + $0x10] sm:%s469]
                %481 = vst [vmem:[%s477 + $0x8] sm:%s469] %v480
              $region93: #{tpu_custom_call.1} parent=87 // loop_footer
                %s475 = sadd.s32 1, %s471
              $region94: #{tpu_custom_call.1} parent=87 // loop_footer_branch
                %470 = sbr.rel target = $region90
              $region95: #{tpu_custom_call.1} parent=87 // loop_exit
                _
            $region88: #{tpu_custom_call.1} parent=79 // pred_fallthru
              _
          $region80: #{tpu_custom_call.1} parent=75 // pred_fallthru
            _
          %498 = vnop
        $region76: #{tpu_custom_call.1} parent=71 // pred_fallthru
          _
      $region72: #{tpu_custom_call.1} parent=5 // pred_fallthru
        _
      %p499 = scmp.le.s32.totalorder 1, %s24
      %p500 = scmp.lt.s32.totalorder %s24, 9
      %p501 = pnand %p499, %p500
      %p502 = pneg %p501
      // Predicated region
      $region111: #{tpu_custom_call.1} parent=5 // pred_check
        _
      $region112: #{tpu_custom_call.1} parent=5 // pred_check_branch
        %504 = sbr.rel (%p501) target = $region114
      $region113: #{tpu_custom_call.1} parent=5 // pred_region
        %s505 = ssub.s32 %s24, 1
        %s506 = sand.u32 %s53, 1
        %s507 = sand.u32 %s53, 1
        %s508 = smul.addr %s507, 16
        %s509 = scalar_lea.vmem [#allocation11], %s508
        // Predicated region
        $region115: #{tpu_custom_call.1} parent=113 // pred_check
          %p510 = pneg %p66
        $region116: #{tpu_custom_call.1} parent=113 // pred_check_branch
          %512 = sbr.rel (%p510) target = $region118
        $region117: #{tpu_custom_call.1} parent=113 // pred_region
          _
        $region118: #{tpu_custom_call.1} parent=113 // pred_fallthru
          _
        %s513 = sand.u32 %s53, 1
        %s514 = sand.u32 %s53, 1
        %s515 = smul.addr %s514, 16
        %s516 = scalar_lea.vmem [#allocation11], %s515
        %p517 = pneg %p66
        %p518 = pneg %p63
        %p519 = pneg %p87
        %p520 = pneg %p84
        %p521 = pneg %p108
        %p522 = pneg %p105
        %p523 = pneg %p129
        %p524 = pneg %p126
        %p525 = pneg %p150
        %p526 = pneg %p147
        %p527 = pneg %p171
        %p528 = pneg %p168
        %p529 = pneg %p192
        %p530 = pneg %p189
        %p531 = pneg %p213
        %p532 = pneg %p210
        %p533 = pneg %p234
        %p534 = pneg %p231
        %p535 = pneg %p255
        %p536 = pneg %p252
        %p537 = pneg %p276
        %p538 = pneg %p273
        %p539 = pneg %p297
        %p540 = pneg %p294
        %p541 = pneg %p318
        %p542 = pneg %p315
        %p543 = pneg %p339
        %p544 = pneg %p336
        %p545 = pneg %p360
        %p546 = pneg %p357
        %p547 = pneg %p390
        %p548 = pneg %p387
        %s549 = sand.u32 %s377, 1
        %s550 = scalar_lea.sflag [#allocation13], %s549
        %s551 = sand.u32 %s377, 1
        %s552 = smul.addr %s551, 4
        %s553 = scalar_lea.vmem [#allocation12], %s552
        %p554 = scmp.eq.s32.totalorder %s33, 0
        %s555 = scalar_select %p554, %s34, 0
        %p556 = scmp.eq.s32.totalorder %s33, 3
        %s557 = scalar_select %p556, %s34, 0
        %s558 = smul.u32 %s34, 128
        %v559 = vlaneseq
        %v560 = vand.u32 %v559, 127
        %v561 = vstv %s558
        %v562 = vadd.s32 %v561, %v560
        %vm563 = vcmp.lt.s32.totalorder %v562, 160
        %v564 = vsel %vm563, 1, 0
        %v565 = vcvt.s32.f32 %v564
        %p566 = scmp.eq.s32.totalorder %s33, 0
        %p567 = scmp.eq.s32.totalorder %s34, 0
        %p568 = pnand %p566, %p567
        %p569 = pneg %p568
        // Predicated region
        $region119: #{tpu_custom_call.1} parent=113 // pred_check
          _
        $region120: #{tpu_custom_call.1} parent=113 // pred_check_branch
          %571 = sbr.rel (%p568) target = $region122
        $region121: #{tpu_custom_call.1} parent=113 // pred_region
          %vm572 = vcmask 7168
          %573 = vst.msk [vmem:[#allocation5] sm:$0xff] %vm572, 0.0
          %vm574 = vcmask 1024
          %575 = vst.msk [vmem:[#allocation5 + $0x8] sm:$0x3] %vm574, 0.0
          %576 = vst.msk [vmem:[#allocation6] sm:$0xff] %vm572, 0.0
          %577 = vst.msk [vmem:[#allocation6 + $0x8] sm:$0x3] %vm574, 0.0
          %578 = vst.msk [vmem:[#allocation7] sm:$0xff] %vm572, 0.0
          %579 = vst.msk [vmem:[#allocation7 + $0x8] sm:$0xff] %vm572, 0.0
          %vm580 = vcmask 3072
          %581 = vst.msk [vmem:[#allocation7 + $0x10] sm:$0xf] %vm580, 0.0
          %582 = vst.msk [vmem:[#allocation8] sm:$0xff] %vm572, 0.0
          %583 = vst.msk [vmem:[#allocation8 + $0x8] sm:$0xff] %vm572, 0.0
          %584 = vst.msk [vmem:[#allocation8 + $0x10] sm:$0xf] %vm580, 0.0
          %585 = vst.msk [vmem:[#allocation9] sm:$0xff] %vm572, 0.0
          %586 = vst.msk [vmem:[#allocation9 + $0x8] sm:$0xff] %vm572, 0.0
          %587 = vst.msk [vmem:[#allocation9 + $0x10] sm:$0xff] %vm572, 0.0
          %588 = vst.msk [vmem:[#allocation9 + $0x18] sm:$0xff] %vm572, 0.0
          %589 = vst.msk [vmem:[#allocation9 + $0x20] sm:$0xff] %vm572, 0.0
          %590 = vst.msk [vmem:[#allocation9 + $0x28] sm:$0xff] %vm572, 0.0
          %591 = vst.msk [vmem:[#allocation9 + $0x30] sm:$0x3] %vm574, 0.0
          %592 = vst.msk [vmem:[#allocation10] sm:$0xff] %vm572, 0.0
          %593 = vst.msk [vmem:[#allocation10 + $0x8] sm:$0xff] %vm572, 0.0
          %594 = vst.msk [vmem:[#allocation10 + $0x10] sm:$0xff] %vm572, 0.0
          %595 = vst.msk [vmem:[#allocation10 + $0x18] sm:$0xff] %vm572, 0.0
          %596 = vst.msk [vmem:[#allocation10 + $0x20] sm:$0xff] %vm572, 0.0
          %597 = vst.msk [vmem:[#allocation10 + $0x28] sm:$0xff] %vm572, 0.0
          %598 = vst.msk [vmem:[#allocation10 + $0x30] sm:$0x3] %vm574, 0.0
        $region122: #{tpu_custom_call.1} parent=113 // pred_fallthru
          _
        // Predicated region
        $region123: #{tpu_custom_call.1} parent=113 // pred_check
          %p599 = pneg %p566
        $region124: #{tpu_custom_call.1} parent=113 // pred_check_branch
          %601 = sbr.rel (%p599) target = $region126
        $region125: #{tpu_custom_call.1} parent=113 // pred_region
          %v602 = vld [vmem:[%s509] sm:$0xff]
          %v603 = vld [vmem:[%s509 + $0x8] sm:$0xff]
          %v604 = vld [vmem:[%s1] sm:$0xff]
          %v605 = vld [vmem:[%s1 + $0x8] sm:$0x3]
          %v606 = vld [vmem:[%s2] sm:$0xff]
          %v607 = vld [vmem:[%s2 + $0x8] sm:$0x3]
          %609 = vset.pattern.permute.xlu0 0
          %610 = vperm.xlu0 %609, %v606
          %v611 = vpop.permute.xlu0 %610
          %614 = vset.pattern.permute.xlu0 0
          %615 = vperm.xlu0 %614, %v607
          %v616 = vpop.permute.xlu0 %615
          %vm618 = vcmask 130048
          %v620 = vsel %vm618, %v604, 0
          %v623 = vsel %vm618, %v605, 0
          %625 = vmatprep.subr.mxu0 0.0
          %626 = vmatpush1.msra.mxu0 0.0
          %627 = vmatprep.subr.mxu0 0.0
          %628 = vmatpush1.msra.mxu0 0.0
          %629 = vmatprep.subr.mxu0 0.0
          %630 = vmatpush1.msra.mxu0 0.0
          %631 = vmatprep.subr.mxu0 0.0
          %632 = vmatpush1.msra.mxu0 0.0
          %633 = vmatprep.subr.mxu0 0.0
          %634 = vmatpush1.msra.mxu0 0.0
          %635 = vmatprep.subr.mxu0 0.0
          %636 = vmatpush1.msra.mxu0 0.0
          %637 = vmatprep.subr.mxu0 0.0
          %638 = vmatpush1.msra.mxu0 0.0
          %639 = vmatprep.subr.mxu0 0.0
          %640 = vmatpush1.msra.mxu0 0.0
          %641 = vmatprep.subr.mxu0 0.0
          %642 = vmatpush1.msra.mxu0 0.0
          %643 = vmatprep.subr.mxu0 0.0
          %644 = vmatpush1.msra.mxu0 0.0
          %645 = vmatprep.subr.mxu0 0.0
          %646 = vmatpush1.msra.mxu0 0.0
          %647 = vmatprep.subr.mxu0 0.0
          %648 = vmatpush1.msra.mxu0 0.0
          %649 = vmatprep.subr.mxu0 0.0
          %650 = vmatpush1.msra.mxu0 0.0
          %651 = vmatprep.subr.mxu0 0.0
          %652 = vmatpush1.msra.mxu0 0.0
          %653 = vmatprep.subr.mxu0 0.0
          %654 = vmatpush1.msra.mxu0 %v603
          %655 = vmatprep.subr.mxu0 0.0
          %656 = vmatpush1.msra.mxu0 %v602
          %657 = vmatprep.subr.mxu0 0.0
          %658 = vmatpush2.msra.mxu0 0.0
          %659 = vmatprep.subr.mxu0 0.0
          %660 = vmatpush2.msra.mxu0 0.0
          %661 = vmatprep.subr.mxu0 0.0
          %662 = vmatpush2.msra.mxu0 0.0
          %663 = vmatprep.subr.mxu0 0.0
          %664 = vmatpush2.msra.mxu0 0.0
          %665 = vmatprep.subr.mxu0 0.0
          %666 = vmatpush2.msra.mxu0 0.0
          %667 = vmatprep.subr.mxu0 0.0
          %668 = vmatpush2.msra.mxu0 0.0
          %669 = vmatprep.subr.mxu0 0.0
          %670 = vmatpush2.msra.mxu0 0.0
          %671 = vmatprep.subr.mxu0 0.0
          %672 = vmatpush2.msra.mxu0 0.0
          %673 = vmatprep.subr.mxu0 0.0
          %674 = vmatpush2.msra.mxu0 0.0
          %675 = vmatprep.subr.mxu0 0.0
          %676 = vmatpush2.msra.mxu0 0.0
          %677 = vmatprep.subr.mxu0 0.0
          %678 = vmatpush2.msra.mxu0 0.0
          %679 = vmatprep.subr.mxu0 0.0
          %680 = vmatpush2.msra.mxu0 0.0
          %681 = vmatprep.subr.mxu0 0.0
          %682 = vmatpush2.msra.mxu0 0.0
          %683 = vmatprep.subr.mxu0 0.0
          %684 = vmatpush2.msra.mxu0 0.0
          %685 = vmatprep.subr.mxu0 0.0
          %686 = vmatpush2.msra.mxu0 0.0
          %687 = vmatprep.subr.mxu0 0.0
          %688 = vmatpush2.msra.mxu0 0.0
          %689 = vmatprep.mubr.f32.mxu0 0.0
          %690 = vmatmul.mubr.f32.gmra.mxu0 %v620
          %v691 = vpop.f32.mrf.mxu0
          %v692 = vadd.f32 %v611, %v691
          %v693 = vpop.f32.mrf.mxu0
          %694 = vmatprep.mubr.f32.mxu0 0.0
          %695 = vmatmul.mubr.f32.gmra.mxu0 %v623
          %v696 = vpop.f32.mrf.mxu0
          %v697 = vadd.f32 %v616, %v696
          %v698 = vpop.f32.mrf.mxu0
          %699 = vdwg.mxu0
          %vm700 = vcmp.ge.f32.partialorder %v692, 0.0
          %vm701 = vcmp.ge.f32.partialorder %v697, 0.0
          %v702 = vmul.f32 %v692, 0.01
          %v703 = vmul.f32 %v697, 0.01
          %v704 = vsel %vm700, %v692, %v702
          %v705 = vsel %vm701, %v697, %v703
          %v706 = vmul.f32 %v704, %v565
          %v707 = vmul.f32 %v705, %v565
          %v708 = vld [vmem:[#allocation5] sm:$0xff]
          %v709 = vld [vmem:[#allocation5 + $0x8] sm:$0x3]
          %710 = vadd.xlane.f32.xlu0 %v706
          %v711 = vpop.xlane.xlu0 %710
          %vm712 = vcmask 1041408
          %v713 = vsel %vm712, %v707, 0.0
          %714 = vadd.xlane.f32.xlu0 %v713
          %v715 = vpop.xlane.xlu0 %714
          %v716 = vadd.f32 %v708, %v711
          %v717 = vadd.f32 %v709, %v715
          %vm718 = vcmask 7168
          %719 = vst.msk [vmem:[#allocation5] sm:$0xff] %vm718, %v716
          %vm720 = vcmask 1024
          %721 = vst.msk [vmem:[#allocation5 + $0x8] sm:$0x3] %vm720, %v717
          %v722 = vld [vmem:[#allocation6] sm:$0xff]
          %v723 = vld [vmem:[#allocation6 + $0x8] sm:$0x3]
          %v724 = vmul.f32 %v706, %v706
          %v725 = vmul.f32 %v707, %v707
          %726 = vadd.xlane.f32.xlu0 %v724
          %v727 = vpop.xlane.xlu0 %726
          %v728 = vsel %vm712, %v725, 0.0
          %729 = vadd.xlane.f32.xlu0 %v728
          %v730 = vpop.xlane.xlu0 %729
          %v731 = vadd.f32 %v722, %v727
          %v732 = vadd.f32 %v723, %v730
          %733 = vst.msk [vmem:[#allocation6] sm:$0xff] %vm718, %v731
          %734 = vst.msk [vmem:[#allocation6 + $0x8] sm:$0x3] %vm720, %v732
          %s735 = sshra.s32 %s558, 7
          %s736 = sand.u32 %s558, 127
          %s737 = smul.addr %s735, 8
          %s738 = scalar_lea.vmem [#allocation2], %s737
          %739 = vst [vmem:[%s738] sm:$0xff] %v706
          %740 = vst [vmem:[%s738 + $0x10] sm:$0x3] %v707
        $region126: #{tpu_custom_call.1} parent=113 // pred_fallthru
          _
        %p741 = scmp.eq.s32.totalorder %s33, 1
        // Predicated region
        $region127: #{tpu_custom_call.1} parent=113 // pred_check
          %p742 = pneg %p741
        $region128: #{tpu_custom_call.1} parent=113 // pred_check_branch
          %744 = sbr.rel (%p742) target = $region130
        $region129: #{tpu_custom_call.1} parent=113 // pred_region
          %s745 = sshra.s32 %s558, 7
          %s746 = sand.u32 %s558, 127
          %s747 = smul.addr %s745, 8
          %s748 = scalar_lea.vmem [#allocation2], %s747
          %v749 = vld [vmem:[%s748] sm:$0xff]
          %v750 = vld [vmem:[%s748 + $0x10] sm:$0x3]
          %v751 = vld [vmem:[#allocation5] sm:$0xff]
          %v752 = vld [vmem:[#allocation5 + $0x8] sm:$0x3]
          %v753 = vmul.f32 %v751, 0.00625
          %v754 = vmul.f32 %v752, 0.00625
          %v755 = vld [vmem:[#allocation6] sm:$0xff]
          %v756 = vld [vmem:[#allocation6 + $0x8] sm:$0x3]
          %v757 = vmul.f32 %v755, 0.00625
          %v758 = vmul.f32 %v756, 0.00625
          %v759 = vmul.f32 %v753, %v753
          %v760 = vmul.f32 %v754, %v754
          %v761 = vsub.f32 %v757, %v759
          %v762 = vsub.f32 %v758, %v760
          %v763 = vld [vmem:[%s3] sm:$0xff]
          %v764 = vld [vmem:[%s3 + $0x8] sm:$0x3]
          %v765 = vadd.f32 %v761, 1e-05
          %v766 = vadd.f32 %v762, 1e-05
          %v767 = vrsqrt.pop %v765
          %v768 = vrsqrt.pop %v766
          %v769 = vmul.f32 %v763, %v767
          %v770 = vmul.f32 %v764, %v768
          %v771 = vld [vmem:[%s4] sm:$0xff]
          %v772 = vld [vmem:[%s4 + $0x8] sm:$0x3]
          %v773 = vmul.f32 %v753, %v769
          %v774 = vmul.f32 %v754, %v770
          %v775 = vsub.f32 %v771, %v773
          %v776 = vsub.f32 %v772, %v774
          %778 = vset.pattern.permute.xlu0 0
          %779 = vperm.xlu0 %778, %v769
          %v780 = vpop.permute.xlu0 %779
          %783 = vset.pattern.permute.xlu0 0
          %784 = vperm.xlu0 %783, %v770
          %v785 = vpop.permute.xlu0 %784
          %v787 = vmul.f32 %v749, %v780
          %v788 = vmul.f32 %v750, %v785
          %790 = vset.pattern.permute.xlu0 0
          %791 = vperm.xlu0 %790, %v775
          %v792 = vpop.permute.xlu0 %791
          %795 = vset.pattern.permute.xlu0 0
          %796 = vperm.xlu0 %795, %v776
          %v797 = vpop.permute.xlu0 %796
          %v799 = vadd.f32 %v787, %v792
          %v800 = vadd.f32 %v788, %v797
          %v801 = vld [vmem:[%s5] sm:$0xff]
          %v802 = vld [vmem:[%s5 + $0x8] sm:$0xff]
          %v803 = vld [vmem:[%s5 + $0x10] sm:$0xf]
          %v804 = vld [vmem:[%s6] sm:$0xff]
          %v805 = vld [vmem:[%s6 + $0x8] sm:$0xff]
          %v806 = vld [vmem:[%s6 + $0x10] sm:$0xf]
          %808 = vset.pattern.permute.xlu0 0
          %809 = vperm.xlu0 %808, %v804
          %v810 = vpop.permute.xlu0 %809
          %813 = vset.pattern.permute.xlu0 0
          %814 = vperm.xlu0 %813, %v805
          %v815 = vpop.permute.xlu0 %814
          %818 = vset.pattern.permute.xlu0 0
          %819 = vperm.xlu0 %818, %v806
          %v820 = vpop.permute.xlu0 %819
          %vm822 = vcmask 80896
          %v824 = vsel %vm822, %v801, 0
          %v827 = vsel %vm822, %v802, 0
          %v830 = vsel %vm822, %v803, 0
          %vm832 = vcmask 1041408
          %v834 = vsel %vm832, %v800, 0
          %836 = vmatprep.subr.mxu0 0.0
          %837 = vmatpush1.msra.mxu0 0.0
          %838 = vmatprep.subr.mxu0 0.0
          %839 = vmatpush1.msra.mxu0 0.0
          %840 = vmatprep.subr.mxu0 0.0
          %841 = vmatpush1.msra.mxu0 0.0
          %842 = vmatprep.subr.mxu0 0.0
          %843 = vmatpush1.msra.mxu0 0.0
          %844 = vmatprep.subr.mxu0 0.0
          %845 = vmatpush1.msra.mxu0 0.0
          %846 = vmatprep.subr.mxu0 0.0
          %847 = vmatpush1.msra.mxu0 0.0
          %848 = vmatprep.subr.mxu0 0.0
          %849 = vmatpush1.msra.mxu0 0.0
          %850 = vmatprep.subr.mxu0 0.0
          %851 = vmatpush1.msra.mxu0 0.0
          %852 = vmatprep.subr.mxu0 0.0
          %853 = vmatpush1.msra.mxu0 0.0
          %854 = vmatprep.subr.mxu0 0.0
          %855 = vmatpush1.msra.mxu0 0.0
          %856 = vmatprep.subr.mxu0 0.0
          %857 = vmatpush1.msra.mxu0 0.0
          %858 = vmatprep.subr.mxu0 0.0
          %859 = vmatpush1.msra.mxu0 0.0
          %860 = vmatprep.subr.mxu0 0.0
          %861 = vmatpush1.msra.mxu0 0.0
          %862 = vmatprep.subr.mxu0 0.0
          %863 = vmatpush1.msra.mxu0 0.0
          %864 = vmatprep.subr.mxu0 0.0
          %865 = vmatpush1.msra.mxu0 %v834
          %866 = vmatprep.subr.mxu0 0.0
          %867 = vmatpush1.msra.mxu0 %v799
          %868 = vmatprep.subr.mxu0 0.0
          %869 = vmatpush2.msra.mxu0 0.0
          %870 = vmatprep.subr.mxu0 0.0
          %871 = vmatpush2.msra.mxu0 0.0
          %872 = vmatprep.subr.mxu0 0.0
          %873 = vmatpush2.msra.mxu0 0.0
          %874 = vmatprep.subr.mxu0 0.0
          %875 = vmatpush2.msra.mxu0 0.0
          %876 = vmatprep.subr.mxu0 0.0
          %877 = vmatpush2.msra.mxu0 0.0
          %878 = vmatprep.subr.mxu0 0.0
          %879 = vmatpush2.msra.mxu0 0.0
          %880 = vmatprep.subr.mxu0 0.0
          %881 = vmatpush2.msra.mxu0 0.0
          %882 = vmatprep.subr.mxu0 0.0
          %883 = vmatpush2.msra.mxu0 0.0
          %884 = vmatprep.subr.mxu0 0.0
          %885 = vmatpush2.msra.mxu0 0.0
          %886 = vmatprep.subr.mxu0 0.0
          %887 = vmatpush2.msra.mxu0 0.0
          %888 = vmatprep.subr.mxu0 0.0
          %889 = vmatpush2.msra.mxu0 0.0
          %890 = vmatprep.subr.mxu0 0.0
          %891 = vmatpush2.msra.mxu0 0.0
          %892 = vmatprep.subr.mxu0 0.0
          %893 = vmatpush2.msra.mxu0 0.0
          %894 = vmatprep.subr.mxu0 0.0
          %895 = vmatpush2.msra.mxu0 0.0
          %896 = vmatprep.subr.mxu0 0.0
          %897 = vmatpush2.msra.mxu0 0.0
          %898 = vmatprep.subr.mxu0 0.0
          %899 = vmatpush2.msra.mxu0 0.0
          %900 = vmatprep.mubr.f32.mxu0 0.0
          %901 = vmatmul.mubr.f32.gmra.mxu0 %v824
          %v902 = vpop.f32.mrf.mxu0
          %v903 = vadd.f32 %v810, %v902
          %v904 = vpop.f32.mrf.mxu0
          %905 = vmatprep.mubr.f32.mxu0 0.0
          %906 = vmatmul.mubr.f32.gmra.mxu0 %v827
          %v907 = vpop.f32.mrf.mxu0
          %v908 = vadd.f32 %v815, %v907
          %v909 = vpop.f32.mrf.mxu0
          %910 = vmatprep.mubr.f32.mxu0 0.0
          %911 = vmatmul.mubr.f32.gmra.mxu0 %v830
          %v912 = vpop.f32.mrf.mxu0
          %v913 = vadd.f32 %v820, %v912
          %v914 = vpop.f32.mrf.mxu0
          %915 = vdwg.mxu0
          %vm916 = vcmp.ge.f32.partialorder %v903, 0.0
          %vm917 = vcmp.ge.f32.partialorder %v908, 0.0
          %vm918 = vcmp.ge.f32.partialorder %v913, 0.0
          %v919 = vmul.f32 %v903, 0.01
          %v920 = vmul.f32 %v908, 0.01
          %v921 = vmul.f32 %v913, 0.01
          %v922 = vsel %vm916, %v903, %v919
          %v923 = vsel %vm917, %v908, %v920
          %v924 = vsel %vm918, %v913, %v921
          %v925 = vmul.f32 %v922, %v565
          %v926 = vmul.f32 %v923, %v565
          %v927 = vmul.f32 %v924, %v565
          %v928 = vld [vmem:[#allocation7] sm:$0xff]
          %v929 = vld [vmem:[#allocation7 + $0x8] sm:$0xff]
          %v930 = vld [vmem:[#allocation7 + $0x10] sm:$0xf]
          %931 = vadd.xlane.f32.xlu0 %v925
          %v932 = vpop.xlane.xlu0 %931
          %933 = vadd.xlane.f32.xlu0 %v926
          %v934 = vpop.xlane.xlu0 %933
          %vm935 = vcmask 1043456
          %v936 = vsel %vm935, %v927, 0.0
          %937 = vadd.xlane.f32.xlu0 %v936
          %v938 = vpop.xlane.xlu0 %937
          %v939 = vadd.f32 %v928, %v932
          %v940 = vadd.f32 %v929, %v934
          %v941 = vadd.f32 %v930, %v938
          %vm942 = vcmask 7168
          %943 = vst.msk [vmem:[#allocation7] sm:$0xff] %vm942, %v939
          %944 = vst.msk [vmem:[#allocation7 + $0x8] sm:$0xff] %vm942, %v940
          %vm945 = vcmask 3072
          %946 = vst.msk [vmem:[#allocation7 + $0x10] sm:$0xf] %vm945, %v941
          %v947 = vld [vmem:[#allocation8] sm:$0xff]
          %v948 = vld [vmem:[#allocation8 + $0x8] sm:$0xff]
          %v949 = vld [vmem:[#allocation8 + $0x10] sm:$0xf]
          %v950 = vmul.f32 %v925, %v925
          %v951 = vmul.f32 %v926, %v926
          %v952 = vmul.f32 %v927, %v927
          %953 = vadd.xlane.f32.xlu0 %v950
          %v954 = vpop.xlane.xlu0 %953
          %955 = vadd.xlane.f32.xlu0 %v951
          %v956 = vpop.xlane.xlu0 %955
          %v957 = vsel %vm935, %v952, 0.0
          %958 = vadd.xlane.f32.xlu0 %v957
          %v959 = vpop.xlane.xlu0 %958
          %v960 = vadd.f32 %v947, %v954
          %v961 = vadd.f32 %v948, %v956
          %v962 = vadd.f32 %v949, %v959
          %963 = vst.msk [vmem:[#allocation8] sm:$0xff] %vm942, %v960
          %964 = vst.msk [vmem:[#allocation8 + $0x8] sm:$0xff] %vm942, %v961
          %965 = vst.msk [vmem:[#allocation8 + $0x10] sm:$0xf] %vm945, %v962
          %s966 = smul.addr %s745, 8
          %s967 = scalar_lea.vmem [#allocation3], %s966
          %968 = vst [vmem:[%s967] sm:$0xff] %v925
          %969 = vst [vmem:[%s967 + $0x10] sm:$0xff] %v926
          %970 = vst [vmem:[%s967 + $0x20] sm:$0xf] %v927
        $region130: #{tpu_custom_call.1} parent=113 // pred_fallthru
          _
        %p971 = scmp.eq.s32.totalorder %s33, 2
        // Predicated region
        $region131: #{tpu_custom_call.1} parent=113 // pred_check
          %p972 = pneg %p971
        $region132: #{tpu_custom_call.1} parent=113 // pred_check_branch
          %974 = sbr.rel (%p972) target = $region134
        $region133: #{tpu_custom_call.1} parent=113 // pred_region
          %s975 = sshra.s32 %s558, 7
          %s976 = sand.u32 %s558, 127
          %s977 = smul.addr %s975, 8
          %s978 = scalar_lea.vmem [#allocation3], %s977
          %v979 = vld [vmem:[%s978] sm:$0xff]
          %v980 = vld [vmem:[%s978 + $0x10] sm:$0xff]
          %v981 = vld [vmem:[%s978 + $0x20] sm:$0xf]
          %v982 = vld [vmem:[#allocation7] sm:$0xff]
          %v983 = vld [vmem:[#allocation7 + $0x8] sm:$0xff]
          %v984 = vld [vmem:[#allocation7 + $0x10] sm:$0xf]
          %v985 = vmul.f32 %v982, 0.00625
          %v986 = vmul.f32 %v983, 0.00625
          %v987 = vmul.f32 %v984, 0.00625
          %v988 = vld [vmem:[#allocation8] sm:$0xff]
          %v989 = vld [vmem:[#allocation8 + $0x8] sm:$0xff]
          %v990 = vld [vmem:[#allocation8 + $0x10] sm:$0xf]
          %v991 = vmul.f32 %v988, 0.00625
          %v992 = vmul.f32 %v989, 0.00625
          %v993 = vmul.f32 %v990, 0.00625
          %v994 = vmul.f32 %v985, %v985
          %v995 = vmul.f32 %v986, %v986
          %v996 = vmul.f32 %v987, %v987
          %v997 = vsub.f32 %v991, %v994
          %v998 = vsub.f32 %v992, %v995
          %v999 = vsub.f32 %v993, %v996
          %v1000 = vld [vmem:[%s7] sm:$0xff]
          %v1001 = vld [vmem:[%s7 + $0x8] sm:$0xff]
          %v1002 = vld [vmem:[%s7 + $0x10] sm:$0xf]
          %v1003 = vadd.f32 %v997, 1e-05
          %v1004 = vadd.f32 %v998, 1e-05
          %v1005 = vadd.f32 %v999, 1e-05
          %v1006 = vrsqrt.pop %v1003
          %v1007 = vrsqrt.pop %v1004
          %v1008 = vrsqrt.pop %v1005
          %v1009 = vmul.f32 %v1000, %v1006
          %v1010 = vmul.f32 %v1001, %v1007
          %v1011 = vmul.f32 %v1002, %v1008
          %v1012 = vld [vmem:[%s8] sm:$0xff]
          %v1013 = vld [vmem:[%s8 + $0x8] sm:$0xff]
          %v1014 = vld [vmem:[%s8 + $0x10] sm:$0xf]
          %v1015 = vmul.f32 %v985, %v1009
          %v1016 = vmul.f32 %v986, %v1010
          %v1017 = vmul.f32 %v987, %v1011
          %v1018 = vsub.f32 %v1012, %v1015
          %v1019 = vsub.f32 %v1013, %v1016
          %v1020 = vsub.f32 %v1014, %v1017
          %1022 = vset.pattern.permute.xlu0 0
          %1023 = vperm.xlu0 %1022, %v1009
          %v1024 = vpop.permute.xlu0 %1023
          %1027 = vset.pattern.permute.xlu0 0
          %1028 = vperm.xlu0 %1027, %v1010
          %v1029 = vpop.permute.xlu0 %1028
          %1032 = vset.pattern.permute.xlu0 0
          %1033 = vperm.xlu0 %1032, %v1011
          %v1034 = vpop.permute.xlu0 %1033
          %v1036 = vmul.f32 %v979, %v1024
          %v1037 = vmul.f32 %v980, %v1029
          %v1038 = vmul.f32 %v981, %v1034
          %1040 = vset.pattern.permute.xlu0 0
          %1041 = vperm.xlu0 %1040, %v1018
          %v1042 = vpop.permute.xlu0 %1041
          %1045 = vset.pattern.permute.xlu0 0
          %1046 = vperm.xlu0 %1045, %v1019
          %v1047 = vpop.permute.xlu0 %1046
          %1050 = vset.pattern.permute.xlu0 0
          %1051 = vperm.xlu0 %1050, %v1020
          %v1052 = vpop.permute.xlu0 %1051
          %v1054 = vadd.f32 %v1036, %v1042
          %v1055 = vadd.f32 %v1037, %v1047
          %v1056 = vadd.f32 %v1038, %v1052
          %v1057 = vld [vmem:[%s9] sm:$0xff]
          %v1058 = vld [vmem:[%s9 + $0x8] sm:$0xff]
          %v1059 = vld [vmem:[%s9 + $0x10] sm:$0xff]
          %v1060 = vld [vmem:[%s9 + $0x18] sm:$0xff]
          %v1061 = vld [vmem:[%s9 + $0x20] sm:$0xff]
          %v1062 = vld [vmem:[%s9 + $0x28] sm:$0xff]
          %v1063 = vld [vmem:[%s9 + $0x30] sm:$0x3]
          %v1064 = vld [vmem:[%s10] sm:$0xff]
          %v1065 = vld [vmem:[%s10 + $0x8] sm:$0xff]
          %v1066 = vld [vmem:[%s10 + $0x10] sm:$0xff]
          %v1067 = vld [vmem:[%s10 + $0x18] sm:$0xff]
          %v1068 = vld [vmem:[%s10 + $0x20] sm:$0xff]
          %v1069 = vld [vmem:[%s10 + $0x28] sm:$0xff]
          %v1070 = vld [vmem:[%s10 + $0x30] sm:$0x3]
          %1072 = vset.pattern.permute.xlu0 0
          %1073 = vperm.xlu0 %1072, %v1064
          %v1074 = vpop.permute.xlu0 %1073
          %1077 = vset.pattern.permute.xlu0 0
          %1078 = vperm.xlu0 %1077, %v1065
          %v1079 = vpop.permute.xlu0 %1078
          %1082 = vset.pattern.permute.xlu0 0
          %1083 = vperm.xlu0 %1082, %v1066
          %v1084 = vpop.permute.xlu0 %1083
          %1087 = vset.pattern.permute.xlu0 0
          %1088 = vperm.xlu0 %1087, %v1067
          %v1089 = vpop.permute.xlu0 %1088
          %1092 = vset.pattern.permute.xlu0 0
          %1093 = vperm.xlu0 %1092, %v1068
          %v1094 = vpop.permute.xlu0 %1093
          %1097 = vset.pattern.permute.xlu0 0
          %1098 = vperm.xlu0 %1097, %v1069
          %v1099 = vpop.permute.xlu0 %1098
          %1102 = vset.pattern.permute.xlu0 0
          %1103 = vperm.xlu0 %1102, %v1070
          %v1104 = vpop.permute.xlu0 %1103
          %vm1106 = vcmask 162816
          %v1108 = vsel %vm1106, %v1057, 0
          %v1111 = vsel %vm1106, %v1058, 0
          %v1114 = vsel %vm1106, %v1059, 0
          %v1117 = vsel %vm1106, %v1060, 0
          %v1120 = vsel %vm1106, %v1061, 0
          %v1123 = vsel %vm1106, %v1062, 0
          %v1126 = vsel %vm1106, %v1063, 0
          %vm1128 = vcmask 1043456
          %v1130 = vsel %vm1128, %v1056, 0
          %1132 = vmatprep.subr.mxu0 0.0
          %1133 = vmatpush1.msra.mxu0 0.0
          %1134 = vmatprep.subr.mxu0 0.0
          %1135 = vmatpush1.msra.mxu0 0.0
          %1136 = vmatprep.subr.mxu0 0.0
          %1137 = vmatpush1.msra.mxu0 0.0
          %1138 = vmatprep.subr.mxu0 0.0
          %1139 = vmatpush1.msra.mxu0 0.0
          %1140 = vmatprep.subr.mxu0 0.0
          %1141 = vmatpush1.msra.mxu0 0.0
          %1142 = vmatprep.subr.mxu0 0.0
          %1143 = vmatpush1.msra.mxu0 0.0
          %1144 = vmatprep.subr.mxu0 0.0
          %1145 = vmatpush1.msra.mxu0 0.0
          %1146 = vmatprep.subr.mxu0 0.0
          %1147 = vmatpush1.msra.mxu0 0.0
          %1148 = vmatprep.subr.mxu0 0.0
          %1149 = vmatpush1.msra.mxu0 0.0
          %1150 = vmatprep.subr.mxu0 0.0
          %1151 = vmatpush1.msra.mxu0 0.0
          %1152 = vmatprep.subr.mxu0 0.0
          %1153 = vmatpush1.msra.mxu0 0.0
          %1154 = vmatprep.subr.mxu0 0.0
          %1155 = vmatpush1.msra.mxu0 0.0
          %1156 = vmatprep.subr.mxu0 0.0
          %1157 = vmatpush1.msra.mxu0 0.0
          %1158 = vmatprep.subr.mxu0 0.0
          %1159 = vmatpush1.msra.mxu0 %v1130
          %1160 = vmatprep.subr.mxu0 0.0
          %1161 = vmatpush1.msra.mxu0 %v1055
          %1162 = vmatprep.subr.mxu0 0.0
          %1163 = vmatpush1.msra.mxu0 %v1054
          %1164 = vmatprep.subr.mxu0 0.0
          %1165 = vmatpush2.msra.mxu0 0.0
          %1166 = vmatprep.subr.mxu0 0.0
          %1167 = vmatpush2.msra.mxu0 0.0
          %1168 = vmatprep.subr.mxu0 0.0
          %1169 = vmatpush2.msra.mxu0 0.0
          %1170 = vmatprep.subr.mxu0 0.0
          %1171 = vmatpush2.msra.mxu0 0.0
          %1172 = vmatprep.subr.mxu0 0.0
          %1173 = vmatpush2.msra.mxu0 0.0
          %1174 = vmatprep.subr.mxu0 0.0
          %1175 = vmatpush2.msra.mxu0 0.0
          %1176 = vmatprep.subr.mxu0 0.0
          %1177 = vmatpush2.msra.mxu0 0.0
          %1178 = vmatprep.subr.mxu0 0.0
          %1179 = vmatpush2.msra.mxu0 0.0
          %1180 = vmatprep.subr.mxu0 0.0
          %1181 = vmatpush2.msra.mxu0 0.0
          %1182 = vmatprep.subr.mxu0 0.0
          %1183 = vmatpush2.msra.mxu0 0.0
          %1184 = vmatprep.subr.mxu0 0.0
          %1185 = vmatpush2.msra.mxu0 0.0
          %1186 = vmatprep.subr.mxu0 0.0
          %1187 = vmatpush2.msra.mxu0 0.0
          %1188 = vmatprep.subr.mxu0 0.0
          %1189 = vmatpush2.msra.mxu0 0.0
          %1190 = vmatprep.subr.mxu0 0.0
          %1191 = vmatpush2.msra.mxu0 0.0
          %1192 = vmatprep.subr.mxu0 0.0
          %1193 = vmatpush2.msra.mxu0 0.0
          %1194 = vmatprep.subr.mxu0 0.0
          %1195 = vmatpush2.msra.mxu0 0.0
          %1196 = vmatprep.mubr.f32.mxu0 0.0
          %1197 = vmatmul.mubr.f32.gmra.mxu0 %v1108
          %v1198 = vpop.f32.mrf.mxu0
          %v1199 = vadd.f32 %v1074, %v1198
          %v1200 = vpop.f32.mrf.mxu0
          %1201 = vmatprep.mubr.f32.mxu0 0.0
          %1202 = vmatmul.mubr.f32.gmra.mxu0 %v1111
          %v1203 = vpop.f32.mrf.mxu0
          %v1204 = vadd.f32 %v1079, %v1203
          %v1205 = vpop.f32.mrf.mxu0
          %1206 = vmatprep.mubr.f32.mxu0 0.0
          %1207 = vmatmul.mubr.f32.gmra.mxu0 %v1114
          %v1208 = vpop.f32.mrf.mxu0
          %v1209 = vadd.f32 %v1084, %v1208
          %v1210 = vpop.f32.mrf.mxu0
          %1211 = vmatprep.mubr.f32.mxu0 0.0
          %1212 = vmatmul.mubr.f32.gmra.mxu0 %v1117
          %v1213 = vpop.f32.mrf.mxu0
          %v1214 = vadd.f32 %v1089, %v1213
          %v1215 = vpop.f32.mrf.mxu0
          %1216 = vmatprep.mubr.f32.mxu0 0.0
          %1217 = vmatmul.mubr.f32.gmra.mxu0 %v1120
          %v1218 = vpop.f32.mrf.mxu0
          %v1219 = vadd.f32 %v1094, %v1218
          %v1220 = vpop.f32.mrf.mxu0
          %1221 = vmatprep.mubr.f32.mxu0 0.0
          %1222 = vmatmul.mubr.f32.gmra.mxu0 %v1123
          %v1223 = vpop.f32.mrf.mxu0
          %v1224 = vadd.f32 %v1099, %v1223
          %v1225 = vpop.f32.mrf.mxu0
          %1226 = vmatprep.mubr.f32.mxu0 0.0
          %1227 = vmatmul.mubr.f32.gmra.mxu0 %v1126
          %v1228 = vpop.f32.mrf.mxu0
          %v1229 = vadd.f32 %v1104, %v1228
          %v1230 = vpop.f32.mrf.mxu0
          %1231 = vdwg.mxu0
          %vm1232 = vcmp.ge.f32.partialorder %v1199, 0.0
          %vm1233 = vcmp.ge.f32.partialorder %v1204, 0.0
          %vm1234 = vcmp.ge.f32.partialorder %v1209, 0.0
          %vm1235 = vcmp.ge.f32.partialorder %v1214, 0.0
          %vm1236 = vcmp.ge.f32.partialorder %v1219, 0.0
          %vm1237 = vcmp.ge.f32.partialorder %v1224, 0.0
          %vm1238 = vcmp.ge.f32.partialorder %v1229, 0.0
          %v1239 = vmul.f32 %v1199, 0.01
          %v1240 = vmul.f32 %v1204, 0.01
          %v1241 = vmul.f32 %v1209, 0.01
          %v1242 = vmul.f32 %v1214, 0.01
          %v1243 = vmul.f32 %v1219, 0.01
          %v1244 = vmul.f32 %v1224, 0.01
          %v1245 = vmul.f32 %v1229, 0.01
          %v1246 = vsel %vm1232, %v1199, %v1239
          %v1247 = vsel %vm1233, %v1204, %v1240
          %v1248 = vsel %vm1234, %v1209, %v1241
          %v1249 = vsel %vm1235, %v1214, %v1242
          %v1250 = vsel %vm1236, %v1219, %v1243
          %v1251 = vsel %vm1237, %v1224, %v1244
          %v1252 = vsel %vm1238, %v1229, %v1245
          %v1253 = vmul.f32 %v1246, %v565
          %v1254 = vmul.f32 %v1247, %v565
          %v1255 = vmul.f32 %v1248, %v565
          %v1256 = vmul.f32 %v1249, %v565
          %v1257 = vmul.f32 %v1250, %v565
          %v1258 = vmul.f32 %v1251, %v565
          %v1259 = vmul.f32 %v1252, %v565
          %v1260 = vld [vmem:[#allocation9] sm:$0xff]
          %v1261 = vld [vmem:[#allocation9 + $0x8] sm:$0xff]
          %v1262 = vld [vmem:[#allocation9 + $0x10] sm:$0xff]
          %v1263 = vld [vmem:[#allocation9 + $0x18] sm:$0xff]
          %v1264 = vld [vmem:[#allocation9 + $0x20] sm:$0xff]
          %v1265 = vld [vmem:[#allocation9 + $0x28] sm:$0xff]
          %v1266 = vld [vmem:[#allocation9 + $0x30] sm:$0x3]
          %1267 = vadd.xlane.f32.xlu0 %v1253
          %v1268 = vpop.xlane.xlu0 %1267
          %1269 = vadd.xlane.f32.xlu0 %v1254
          %v1270 = vpop.xlane.xlu0 %1269
          %1271 = vadd.xlane.f32.xlu0 %v1255
          %v1272 = vpop.xlane.xlu0 %1271
          %1273 = vadd.xlane.f32.xlu0 %v1256
          %v1274 = vpop.xlane.xlu0 %1273
          %1275 = vadd.xlane.f32.xlu0 %v1257
          %v1276 = vpop.xlane.xlu0 %1275
          %1277 = vadd.xlane.f32.xlu0 %v1258
          %v1278 = vpop.xlane.xlu0 %1277
          %vm1279 = vcmask 1041408
          %v1280 = vsel %vm1279, %v1259, 0.0
          %1281 = vadd.xlane.f32.xlu0 %v1280
          %v1282 = vpop.xlane.xlu0 %1281
          %v1283 = vadd.f32 %v1260, %v1268
          %v1284 = vadd.f32 %v1261, %v1270
          %v1285 = vadd.f32 %v1262, %v1272
          %v1286 = vadd.f32 %v1263, %v1274
          %v1287 = vadd.f32 %v1264, %v1276
          %v1288 = vadd.f32 %v1265, %v1278
          %v1289 = vadd.f32 %v1266, %v1282
          %vm1290 = vcmask 7168
          %1291 = vst.msk [vmem:[#allocation9] sm:$0xff] %vm1290, %v1283
          %1292 = vst.msk [vmem:[#allocation9 + $0x8] sm:$0xff] %vm1290, %v1284
          %1293 = vst.msk [vmem:[#allocation9 + $0x10] sm:$0xff] %vm1290, %v1285
          %1294 = vst.msk [vmem:[#allocation9 + $0x18] sm:$0xff] %vm1290, %v1286
          %1295 = vst.msk [vmem:[#allocation9 + $0x20] sm:$0xff] %vm1290, %v1287
          %1296 = vst.msk [vmem:[#allocation9 + $0x28] sm:$0xff] %vm1290, %v1288
          %vm1297 = vcmask 1024
          %1298 = vst.msk [vmem:[#allocation9 + $0x30] sm:$0x3] %vm1297, %v1289
          %v1299 = vld [vmem:[#allocation10] sm:$0xff]
          %v1300 = vld [vmem:[#allocation10 + $0x8] sm:$0xff]
          %v1301 = vld [vmem:[#allocation10 + $0x10] sm:$0xff]
          %v1302 = vld [vmem:[#allocation10 + $0x18] sm:$0xff]
          %v1303 = vld [vmem:[#allocation10 + $0x20] sm:$0xff]
          %v1304 = vld [vmem:[#allocation10 + $0x28] sm:$0xff]
          %v1305 = vld [vmem:[#allocation10 + $0x30] sm:$0x3]
          %v1306 = vmul.f32 %v1253, %v1253
          %v1307 = vmul.f32 %v1254, %v1254
          %v1308 = vmul.f32 %v1255, %v1255
          %v1309 = vmul.f32 %v1256, %v1256
          %v1310 = vmul.f32 %v1257, %v1257
          %v1311 = vmul.f32 %v1258, %v1258
          %v1312 = vmul.f32 %v1259, %v1259
          %1313 = vadd.xlane.f32.xlu0 %v1306
          %v1314 = vpop.xlane.xlu0 %1313
          %1315 = vadd.xlane.f32.xlu0 %v1307
          %v1316 = vpop.xlane.xlu0 %1315
          %1317 = vadd.xlane.f32.xlu0 %v1308
          %v1318 = vpop.xlane.xlu0 %1317
          %1319 = vadd.xlane.f32.xlu0 %v1309
          %v1320 = vpop.xlane.xlu0 %1319
          %1321 = vadd.xlane.f32.xlu0 %v1310
          %v1322 = vpop.xlane.xlu0 %1321
          %1323 = vadd.xlane.f32.xlu0 %v1311
          %v1324 = vpop.xlane.xlu0 %1323
          %v1325 = vsel %vm1279, %v1312, 0.0
          %1326 = vadd.xlane.f32.xlu0 %v1325
          %v1327 = vpop.xlane.xlu0 %1326
          %v1328 = vadd.f32 %v1299, %v1314
          %v1329 = vadd.f32 %v1300, %v1316
          %v1330 = vadd.f32 %v1301, %v1318
          %v1331 = vadd.f32 %v1302, %v1320
          %v1332 = vadd.f32 %v1303, %v1322
          %v1333 = vadd.f32 %v1304, %v1324
          %v1334 = vadd.f32 %v1305, %v1327
          %1335 = vst.msk [vmem:[#allocation10] sm:$0xff] %vm1290, %v1328
          %1336 = vst.msk [vmem:[#allocation10 + $0x8] sm:$0xff] %vm1290, %v1329
          %1337 = vst.msk [vmem:[#allocation10 + $0x10] sm:$0xff] %vm1290, %v1330
          %1338 = vst.msk [vmem:[#allocation10 + $0x18] sm:$0xff] %vm1290, %v1331
          %1339 = vst.msk [vmem:[#allocation10 + $0x20] sm:$0xff] %vm1290, %v1332
          %1340 = vst.msk [vmem:[#allocation10 + $0x28] sm:$0xff] %vm1290, %v1333
          %1341 = vst.msk [vmem:[#allocation10 + $0x30] sm:$0x3] %vm1297, %v1334
          %s1342 = smul.addr %s975, 8
          %s1343 = scalar_lea.vmem [#allocation4], %s1342
          %1344 = vst [vmem:[%s1343] sm:$0xff] %v1253
          %1345 = vst [vmem:[%s1343 + $0x10] sm:$0xff] %v1254
          %1346 = vst [vmem:[%s1343 + $0x20] sm:$0xff] %v1255
          %1347 = vst [vmem:[%s1343 + $0x30] sm:$0xff] %v1256
          %1348 = vst [vmem:[%s1343 + $0x40] sm:$0xff] %v1257
          %1349 = vst [vmem:[%s1343 + $0x50] sm:$0xff] %v1258
          %1350 = vst [vmem:[%s1343 + $0x60] sm:$0x3] %v1259
        $region134: #{tpu_custom_call.1} parent=113 // pred_fallthru
          _
        %p1351 = scmp.eq.s32.totalorder %s33, 3
        // Predicated region
        $region135: #{tpu_custom_call.1} parent=113 // pred_check
          %p1352 = pneg %p1351
        $region136: #{tpu_custom_call.1} parent=113 // pred_check_branch
          %1354 = sbr.rel (%p1352) target = $region138
        $region137: #{tpu_custom_call.1} parent=113 // pred_region
          %s1355 = sshra.s32 %s558, 7
          %s1356 = sand.u32 %s558, 127
          %s1357 = smul.addr %s1355, 8
          %s1358 = scalar_lea.vmem [#allocation4], %s1357
          %v1359 = vld [vmem:[%s1358] sm:$0xff]
          %v1360 = vld [vmem:[%s1358 + $0x10] sm:$0xff]
          %v1361 = vld [vmem:[%s1358 + $0x20] sm:$0xff]
          %v1362 = vld [vmem:[%s1358 + $0x30] sm:$0xff]
          %v1363 = vld [vmem:[%s1358 + $0x40] sm:$0xff]
          %v1364 = vld [vmem:[%s1358 + $0x50] sm:$0xff]
          %v1365 = vld [vmem:[%s1358 + $0x60] sm:$0x3]
          %v1366 = vld [vmem:[#allocation9] sm:$0xff]
          %v1367 = vld [vmem:[#allocation9 + $0x8] sm:$0xff]
          %v1368 = vld [vmem:[#allocation9 + $0x10] sm:$0xff]
          %v1369 = vld [vmem:[#allocation9 + $0x18] sm:$0xff]
          %v1370 = vld [vmem:[#allocation9 + $0x20] sm:$0xff]
          %v1371 = vld [vmem:[#allocation9 + $0x28] sm:$0xff]
          %v1372 = vld [vmem:[#allocation9 + $0x30] sm:$0x3]
          %v1373 = vmul.f32 %v1366, 0.00625
          %v1374 = vmul.f32 %v1367, 0.00625
          %v1375 = vmul.f32 %v1368, 0.00625
          %v1376 = vmul.f32 %v1369, 0.00625
          %v1377 = vmul.f32 %v1370, 0.00625
          %v1378 = vmul.f32 %v1371, 0.00625
          %v1379 = vmul.f32 %v1372, 0.00625
          %v1380 = vld [vmem:[#allocation10] sm:$0xff]
          %v1381 = vld [vmem:[#allocation10 + $0x8] sm:$0xff]
          %v1382 = vld [vmem:[#allocation10 + $0x10] sm:$0xff]
          %v1383 = vld [vmem:[#allocation10 + $0x18] sm:$0xff]
          %v1384 = vld [vmem:[#allocation10 + $0x20] sm:$0xff]
          %v1385 = vld [vmem:[#allocation10 + $0x28] sm:$0xff]
          %v1386 = vld [vmem:[#allocation10 + $0x30] sm:$0x3]
          %v1387 = vmul.f32 %v1380, 0.00625
          %v1388 = vmul.f32 %v1381, 0.00625
          %v1389 = vmul.f32 %v1382, 0.00625
          %v1390 = vmul.f32 %v1383, 0.00625
          %v1391 = vmul.f32 %v1384, 0.00625
          %v1392 = vmul.f32 %v1385, 0.00625
          %v1393 = vmul.f32 %v1386, 0.00625
          %v1394 = vmul.f32 %v1373, %v1373
          %v1395 = vmul.f32 %v1374, %v1374
          %v1396 = vmul.f32 %v1375, %v1375
          %v1397 = vmul.f32 %v1376, %v1376
          %v1398 = vmul.f32 %v1377, %v1377
          %v1399 = vmul.f32 %v1378, %v1378
          %v1400 = vmul.f32 %v1379, %v1379
          %v1401 = vsub.f32 %v1387, %v1394
          %v1402 = vsub.f32 %v1388, %v1395
          %v1403 = vsub.f32 %v1389, %v1396
          %v1404 = vsub.f32 %v1390, %v1397
          %v1405 = vsub.f32 %v1391, %v1398
          %v1406 = vsub.f32 %v1392, %v1399
          %v1407 = vsub.f32 %v1393, %v1400
          %v1408 = vld [vmem:[%s11] sm:$0xff]
          %v1409 = vld [vmem:[%s11 + $0x8] sm:$0xff]
          %v1410 = vld [vmem:[%s11 + $0x10] sm:$0xff]
          %v1411 = vld [vmem:[%s11 + $0x18] sm:$0xff]
          %v1412 = vld [vmem:[%s11 + $0x20] sm:$0xff]
          %v1413 = vld [vmem:[%s11 + $0x28] sm:$0xff]
          %v1414 = vld [vmem:[%s11 + $0x30] sm:$0x3]
          %v1415 = vadd.f32 %v1401, 1e-05
          %v1416 = vadd.f32 %v1402, 1e-05
          %v1417 = vadd.f32 %v1403, 1e-05
          %v1418 = vadd.f32 %v1404, 1e-05
          %v1419 = vadd.f32 %v1405, 1e-05
          %v1420 = vadd.f32 %v1406, 1e-05
          %v1421 = vadd.f32 %v1407, 1e-05
          %v1422 = vrsqrt.pop %v1415
          %v1423 = vrsqrt.pop %v1416
          %v1424 = vrsqrt.pop %v1417
          %v1425 = vrsqrt.pop %v1418
          %v1426 = vrsqrt.pop %v1419
          %v1427 = vrsqrt.pop %v1420
          %v1428 = vrsqrt.pop %v1421
          %v1429 = vmul.f32 %v1408, %v1422
          %v1430 = vmul.f32 %v1409, %v1423
          %v1431 = vmul.f32 %v1410, %v1424
          %v1432 = vmul.f32 %v1411, %v1425
          %v1433 = vmul.f32 %v1412, %v1426
          %v1434 = vmul.f32 %v1413, %v1427
          %v1435 = vmul.f32 %v1414, %v1428
          %v1436 = vld [vmem:[%s12] sm:$0xff]
          %v1437 = vld [vmem:[%s12 + $0x8] sm:$0xff]
          %v1438 = vld [vmem:[%s12 + $0x10] sm:$0xff]
          %v1439 = vld [vmem:[%s12 + $0x18] sm:$0xff]
          %v1440 = vld [vmem:[%s12 + $0x20] sm:$0xff]
          %v1441 = vld [vmem:[%s12 + $0x28] sm:$0xff]
          %v1442 = vld [vmem:[%s12 + $0x30] sm:$0x3]
          %v1443 = vmul.f32 %v1373, %v1429
          %v1444 = vmul.f32 %v1374, %v1430
          %v1445 = vmul.f32 %v1375, %v1431
          %v1446 = vmul.f32 %v1376, %v1432
          %v1447 = vmul.f32 %v1377, %v1433
          %v1448 = vmul.f32 %v1378, %v1434
          %v1449 = vmul.f32 %v1379, %v1435
          %v1450 = vsub.f32 %v1436, %v1443
          %v1451 = vsub.f32 %v1437, %v1444
          %v1452 = vsub.f32 %v1438, %v1445
          %v1453 = vsub.f32 %v1439, %v1446
          %v1454 = vsub.f32 %v1440, %v1447
          %v1455 = vsub.f32 %v1441, %v1448
          %v1456 = vsub.f32 %v1442, %v1449
          %1458 = vset.pattern.permute.xlu0 0
          %1459 = vperm.xlu0 %1458, %v1429
          %v1460 = vpop.permute.xlu0 %1459
          %1463 = vset.pattern.permute.xlu0 0
          %1464 = vperm.xlu0 %1463, %v1430
          %v1465 = vpop.permute.xlu0 %1464
          %1468 = vset.pattern.permute.xlu0 0
          %1469 = vperm.xlu0 %1468, %v1431
          %v1470 = vpop.permute.xlu0 %1469
          %1473 = vset.pattern.permute.xlu0 0
          %1474 = vperm.xlu0 %1473, %v1432
          %v1475 = vpop.permute.xlu0 %1474
          %1478 = vset.pattern.permute.xlu0 0
          %1479 = vperm.xlu0 %1478, %v1433
          %v1480 = vpop.permute.xlu0 %1479
          %1483 = vset.pattern.permute.xlu0 0
          %1484 = vperm.xlu0 %1483, %v1434
          %v1485 = vpop.permute.xlu0 %1484
          %1488 = vset.pattern.permute.xlu0 0
          %1489 = vperm.xlu0 %1488, %v1435
          %v1490 = vpop.permute.xlu0 %1489
          %v1492 = vmul.f32 %v1359, %v1460
          %v1493 = vmul.f32 %v1360, %v1465
          %v1494 = vmul.f32 %v1361, %v1470
          %v1495 = vmul.f32 %v1362, %v1475
          %v1496 = vmul.f32 %v1363, %v1480
          %v1497 = vmul.f32 %v1364, %v1485
          %v1498 = vmul.f32 %v1365, %v1490
          %1500 = vset.pattern.permute.xlu0 0
          %1501 = vperm.xlu0 %1500, %v1450
          %v1502 = vpop.permute.xlu0 %1501
          %1505 = vset.pattern.permute.xlu0 0
          %1506 = vperm.xlu0 %1505, %v1451
          %v1507 = vpop.permute.xlu0 %1506
          %1510 = vset.pattern.permute.xlu0 0
          %1511 = vperm.xlu0 %1510, %v1452
          %v1512 = vpop.permute.xlu0 %1511
          %1515 = vset.pattern.permute.xlu0 0
          %1516 = vperm.xlu0 %1515, %v1453
          %v1517 = vpop.permute.xlu0 %1516
          %1520 = vset.pattern.permute.xlu0 0
          %1521 = vperm.xlu0 %1520, %v1454
          %v1522 = vpop.permute.xlu0 %1521
          %1525 = vset.pattern.permute.xlu0 0
          %1526 = vperm.xlu0 %1525, %v1455
          %v1527 = vpop.permute.xlu0 %1526
          %1530 = vset.pattern.permute.xlu0 0
          %1531 = vperm.xlu0 %1530, %v1456
          %v1532 = vpop.permute.xlu0 %1531
          %v1534 = vadd.f32 %v1492, %v1502
          %v1535 = vadd.f32 %v1493, %v1507
          %v1536 = vadd.f32 %v1494, %v1512
          %v1537 = vadd.f32 %v1495, %v1517
          %v1538 = vadd.f32 %v1496, %v1522
          %v1539 = vadd.f32 %v1497, %v1527
          %v1540 = vadd.f32 %v1498, %v1532
          %v1541 = vld [vmem:[%s13] sm:$0xf]
          %v1542 = vld [vmem:[%s14] sm:$0xf]
          %1544 = vset.pattern.permute.xlu0 0
          %1545 = vperm.xlu0 %1544, %v1542
          %v1546 = vpop.permute.xlu0 %1545
          %vm1548 = vcmask 408576
          %v1550 = vsel %vm1548, %v1541, 0
          %vm1552 = vcmask 1041408
          %v1554 = vsel %vm1552, %v1540, 0
          %1556 = vmatprep.subr.mxu0 0.0
          %1557 = vmatpush1.msra.mxu0 0.0
          %1558 = vmatprep.subr.mxu0 0.0
          %1559 = vmatpush1.msra.mxu0 0.0
          %1560 = vmatprep.subr.mxu0 0.0
          %1561 = vmatpush1.msra.mxu0 0.0
          %1562 = vmatprep.subr.mxu0 0.0
          %1563 = vmatpush1.msra.mxu0 0.0
          %1564 = vmatprep.subr.mxu0 0.0
          %1565 = vmatpush1.msra.mxu0 0.0
          %1566 = vmatprep.subr.mxu0 0.0
          %1567 = vmatpush1.msra.mxu0 0.0
          %1568 = vmatprep.subr.mxu0 0.0
          %1569 = vmatpush1.msra.mxu0 0.0
          %1570 = vmatprep.subr.mxu0 0.0
          %1571 = vmatpush1.msra.mxu0 0.0
          %1572 = vmatprep.subr.mxu0 0.0
          %1573 = vmatpush1.msra.mxu0 0.0
          %1574 = vmatprep.subr.mxu0 0.0
          %1575 = vmatpush1.msra.mxu0 %v1554
          %1576 = vmatprep.subr.mxu0 0.0
          %1577 = vmatpush1.msra.mxu0 %v1539
          %1578 = vmatprep.subr.mxu0 0.0
          %1579 = vmatpush1.msra.mxu0 %v1538
          %1580 = vmatprep.subr.mxu0 0.0
          %1581 = vmatpush1.msra.mxu0 %v1537
          %1582 = vmatprep.subr.mxu0 0.0
          %1583 = vmatpush1.msra.mxu0 %v1536
          %1584 = vmatprep.subr.mxu0 0.0
          %1585 = vmatpush1.msra.mxu0 %v1535
          %1586 = vmatprep.subr.mxu0 0.0
          %1587 = vmatpush1.msra.mxu0 %v1534
          %1588 = vmatprep.subr.mxu0 0.0
          %1589 = vmatpush2.msra.mxu0 0.0
          %1590 = vmatprep.subr.mxu0 0.0
          %1591 = vmatpush2.msra.mxu0 0.0
          %1592 = vmatprep.subr.mxu0 0.0
          %1593 = vmatpush2.msra.mxu0 0.0
          %1594 = vmatprep.subr.mxu0 0.0
          %1595 = vmatpush2.msra.mxu0 0.0
          %1596 = vmatprep.subr.mxu0 0.0
          %1597 = vmatpush2.msra.mxu0 0.0
          %1598 = vmatprep.subr.mxu0 0.0
          %1599 = vmatpush2.msra.mxu0 0.0
          %1600 = vmatprep.subr.mxu0 0.0
          %1601 = vmatpush2.msra.mxu0 0.0
          %1602 = vmatprep.subr.mxu0 0.0
          %1603 = vmatpush2.msra.mxu0 0.0
          %1604 = vmatprep.subr.mxu0 0.0
          %1605 = vmatpush2.msra.mxu0 0.0
          %1606 = vmatprep.subr.mxu0 0.0
          %1607 = vmatpush2.msra.mxu0 0.0
          %1608 = vmatprep.subr.mxu0 0.0
          %1609 = vmatpush2.msra.mxu0 0.0
          %1610 = vmatprep.subr.mxu0 0.0
          %1611 = vmatpush2.msra.mxu0 0.0
          %1612 = vmatprep.subr.mxu0 0.0
          %1613 = vmatpush2.msra.mxu0 0.0
          %1614 = vmatprep.subr.mxu0 0.0
          %1615 = vmatpush2.msra.mxu0 0.0
          %1616 = vmatprep.subr.mxu0 0.0
          %1617 = vmatpush2.msra.mxu0 0.0
          %1618 = vmatprep.subr.mxu0 0.0
          %1619 = vmatpush2.msra.mxu0 0.0
          %1620 = vmatprep.mubr.f32.mxu0 0.0
          %1621 = vmatmul.mubr.f32.gmra.mxu0 %v1550
          %v1622 = vpop.f32.mrf.mxu0
          %v1623 = vadd.f32 %v1546, %v1622
          %v1624 = vpop.f32.mrf.mxu0
          %1625 = vdwg.mxu0
          %1626 = vst [vmem:[%s553] sm:$0xf] %v1623
        $region138: #{tpu_custom_call.1} parent=113 // pred_fallthru
          _
        %s1627 = sand.u32 %s377, 1
        %s1628 = scalar_lea.sflag [#allocation13], %s1627
        %s1629 = sand.u32 %s377, 1
        %s1630 = smul.addr %s1629, 4
        %s1631 = scalar_lea.vmem [#allocation12], %s1630
        // Predicated region
        $region139: #{tpu_custom_call.1} parent=113 // pred_check
          %p1632 = pneg %p387
        $region140: #{tpu_custom_call.1} parent=113 // pred_check_branch
          %1634 = sbr.rel (%p1632) target = $region142
        $region141: #{tpu_custom_call.1} parent=113 // pred_region
          %p1635 = scmp.eq.s32.totalorder %s33, 3
          %s1636 = scalar_select %p1635, %s34, 0
          %s1638 = ssub.s32 64, 64
          %1639 = vsyncadd %s1628, %s1638
          %s1640 = smul.addr %s1636, 64
          %s1641 = scalar_lea.hbm %s15, %s1640
          %s1643 = sshll.u32 %s1631, 4
          %s1644 = int_to_ptr.vmem [resolvable:$true] %s1643
          %1646 = dma.vmem_to_hbm [thread:$0]  %s1644, 64, %s1641, %s1628
        $region142: #{tpu_custom_call.1} parent=113 // pred_fallthru
          _
      $region114: #{tpu_custom_call.1} parent=5 // pred_fallthru
        _
      %p1647 = scmp.le.s32.totalorder 2, %s24
      // Predicated region
      $region143: #{tpu_custom_call.1} parent=5 // pred_check
        %p1648 = pneg %p1647
      $region144: #{tpu_custom_call.1} parent=5 // pred_check_branch
        %1650 = sbr.rel (%p1648) target = $region146
      $region145: #{tpu_custom_call.1} parent=5 // pred_region
        %s1651 = ssub.s32 %s24, 2
        // Predicated region
        $region147: #{tpu_custom_call.1} parent=145 // pred_check
          %p1652 = pneg %p393
        $region148: #{tpu_custom_call.1} parent=145 // pred_check_branch
          %1654 = sbr.rel (%p1652) target = $region150
        $region149: #{tpu_custom_call.1} parent=145 // pred_region
          %s1655 = sand.u32 %s378, 1
          %s1656 = scalar_lea.sflag [#allocation13], %s1655
          %s1657 = sand.u32 %s378, 1
          %s1658 = smul.addr %s1657, 4
          %s1659 = scalar_lea.vmem [#allocation12], %s1658
          %1660 = dma.done %s1656, 64
        $region150: #{tpu_custom_call.1} parent=145 // pred_fallthru
          _
      $region146: #{tpu_custom_call.1} parent=5 // pred_fallthru
        _
    $region6: #{tpu_custom_call.1} parent=1 // loop_footer
      %s28 = sadd.s32 1, %s24
    $region7: #{tpu_custom_call.1} parent=1 // loop_footer_branch
      %23 = sbr.rel target = $region3
    $region8: #{tpu_custom_call.1} parent=1 // loop_exit
      _
    %1661 = vsyncpa [#allocation13], 1
    %s1662 = scalar_lea.sflag [#allocation13], 1
    %1663 = vsyncpa %s1662, 1

</llo_original>
